<compile_context>
chip_gen: v5e
topology: v5e:2x2
jax: 0.10.0
libtpu: 0.0.40
codegen_flags: <defaults>
</compile_context>

<pallas_src>
import jax
import jax.numpy as jnp
from jax import lax
from jax.experimental import pallas as pl
from jax.experimental.pallas import tpu as pltpu


# ---------------------------------------------------------------------------
# helpers
# ---------------------------------------------------------------------------

def _full_spec(shape):
    # whole-array block (block_shape == array shape -> exempt from (8,128))
    return pl.BlockSpec(shape, lambda *_: (0,) * len(shape))


def _gelu(x):
    # tanh approximation (EUP-friendly, no erf)
    return 0.5 * x * (1.0 + jnp.tanh(0.7978845608028654 * (x + 0.044715 * x * x * x)))


def _silu(x):
    return x * (1.0 / (1.0 + jnp.exp(-x)))


def _mish(x):
    return x * jnp.tanh(jnp.log(1.0 + jnp.exp(x)))


# ---------------------------------------------------------------------------
# Pallas kernels
# ---------------------------------------------------------------------------

def _dit_embed_kernel(x_ref, cond_ref, text_ref, pos_ref,
                      wt1_ref, wt2_ref,
                      wx_ref, wc_ref, wtx_ref, bproj_ref,
                      wpos_ref, bpos_ref, invfreq_ref,
                      xout_ref, rope_ref):
    """Fused text_embed + input_embed + rotary-freqs for one time tile."""
    bf16 = jnp.bfloat16
    f32 = jnp.float32

    # --- text_embed: absolute positional embedding + pointwise block ---------
    # TODO(synk): real TextEmbedding uses depthwise ConvNeXt blocks along time
    # (needs halo exchange across tiles); a pointwise MLP stand-in is used.
    te = text_ref[...] + pos_ref[...]
    h = jnp.dot(te.astype(bf16), wt1_ref[...], preferred_element_type=f32)
    h = _gelu(h)
    h = jnp.dot(h.astype(bf16), wt2_ref[...], preferred_element_type=f32)
    te = te + h                                            # residual

    # --- input_embed.proj: Linear(cat(x, cond, text_embed)) as 3 matmuls -----
    proj = (jnp.dot(x_ref[...].astype(bf16), wx_ref[...], preferred_element_type=f32)
            + jnp.dot(cond_ref[...].astype(bf16), wc_ref[...], preferred_element_type=f32)
            + jnp.dot(te.astype(bf16), wtx_ref[...], preferred_element_type=f32)
            + bproj_ref[...])

    # --- ConvPositionEmbedding stand-in (+ residual) --------------------------
    # TODO(synk): real ConvPositionEmbedding is two 31-tap grouped Conv1d along
    # time; a pointwise projection with Mish is used instead.
    cpe = jnp.dot(proj.astype(bf16), wpos_ref[...], preferred_element_type=f32) + bpos_ref[...]
    xout_ref[...] = proj + _mish(cpe)

    # --- rotary freqs for this tile's absolute positions ----------------------
    tile_t, dh = rope_ref.shape
    pos = (lax.broadcasted_iota(jnp.int32, (tile_t, dh), 0)
           + pl.program_id(0) * tile_t).astype(f32)
    rope_ref[...] = pos * invfreq_ref[...]


def _time_embed_kernel(st_ref, sd_ref,
                       w1t_ref, b1t_ref, w2t_ref, b2t_ref,
                       w1d_ref, b1d_ref, w2d_ref, b2d_ref,
                       out_ref):
    """t = time_embed(time) + d_embed(dt): both TimestepEmbedding MLPs fused."""
    bf16 = jnp.bfloat16
    f32 = jnp.float32

    ht = jnp.dot(st_ref[...].astype(bf16), w1t_ref[...], preferred_element_type=f32) + b1t_ref[...]
    ht = _silu(ht)
    ht = jnp.dot(ht.astype(bf16), w2t_ref[...], preferred_element_type=f32) + b2t_ref[...]

    hd = jnp.dot(sd_ref[...].astype(bf16), w1d_ref[...], preferred_element_type=f32) + b1d_ref[...]
    hd = _silu(hd)
    hd = jnp.dot(hd.astype(bf16), w2d_ref[...], preferred_element_type=f32) + b2d_ref[...]

    out_ref[...] = ht + hd


# ---------------------------------------------------------------------------
# ExportDitEmbed (synthetic DiT sub-module parameters, Pallas hot paths)
# ---------------------------------------------------------------------------

class ExportDitEmbedPallas:
    MEL_DIM = 100       # mel bins (v4 DiT)
    MEL_PAD = 128       # lane-padded mel dim
    TEXT_DIM = 256      # text/fea feature dim
    TEXT_HIDDEN = 512   # pointwise block hidden
    DIM = 512           # model dim
    DIM_HEAD = 64       # rotary head dim
    FREQ_DIM = 256      # sinusoidal timestep embedding dim
    MAX_POS = 4096      # precomputed positional table length
    TILE_T = 128        # time tile (matches v5e MXU; fine on v6e/v7x)

    def __init__(self, key):
        # TODO(synk): real pretrained DiT sub-module weights are opaque here;
        # synthetic parameters with the same shapes/structure are used.
        ks = jax.random.split(key, 16)
        s = 0.02
        bf16 = jnp.bfloat16
        d, td, th = self.DIM, self.TEXT_DIM, self.TEXT_HIDDEN
        mp, fd = self.MEL_PAD, self.FREQ_DIM

        def w(k, shape):
            return (s * jax.random.normal(k, shape, jnp.float32)).astype(bf16)

        def b(k, n):
            return s * jax.random.normal(k, (1, n), jnp.float32)

        # time_embed / d_embed (TimestepEmbedding MLPs)
        self.w1_t, self.b1_t = w(ks[0], (fd, d)), b(ks[10], d)
        self.w2_t, self.b2_t = w(ks[1], (d, d)), b(ks[11], d)
        self.w1_d, self.b1_d = w(ks[2], (fd, d)), b(ks[12], d)
        self.w2_d, self.b2_d = w(ks[3], (d, d)), b(ks[13], d)

        # text_embed pointwise block stand-in
        self.w_t1 = w(ks[4], (td, th))
        self.w_t2 = w(ks[5], (th, td))

        # input_embed.proj split weights; mel rows >= 100 are exactly zero so
        # the 100->128 lane padding cannot leak into the output.
        row_mask = (jnp.arange(mp) < self.MEL_DIM)[:, None]
        self.w_x = jnp.where(row_mask, s * jax.random.normal(ks[6], (mp, d), jnp.float32), 0.0).astype(bf16)
        self.w_c = jnp.where(row_mask, s * jax.random.normal(ks[7], (mp, d), jnp.float32), 0.0).astype(bf16)
        self.w_tx = w(ks[8], (td, d))
        self.b_proj = b(ks[14], d)

        # ConvPositionEmbedding stand-in
        self.w_pos = w(ks[9], (d, d))
        self.b_pos = b(ks[15], d)

        # text absolute positional table (freqs_cis-style: [cos | sin])
        half = td // 2
        freqs = 1.0 / (10000.0 ** (jnp.arange(half, dtype=jnp.float32) / half))
        tpos = jnp.arange(self.MAX_POS, dtype=jnp.float32)
        ang = tpos[:, None] * freqs[None, :]
        self.text_pos_table = jnp.concatenate([jnp.cos(ang), jnp.sin(ang)], axis=-1)

        # rotary inv_freq, repeat-interleaved to DIM_HEAD lanes
        inv = 1.0 / (10000.0 ** (jnp.arange(0, self.DIM_HEAD, 2, dtype=jnp.float32)
                                 / self.DIM_HEAD))
        self.inv_freq_rep = jnp.repeat(inv, 2).reshape(1, self.DIM_HEAD)

    # --- sinusoidal timestep embedding (tiny; plain XLA) ---------------------
    def _sinus_time_embed(self, t, scale=1000.0):
        half = self.FREQ_DIM // 2
        emb = jnp.exp(jnp.arange(half, dtype=jnp.float32)
                      * (-jnp.log(10000.0) / (half - 1)))
        ang = scale * t.astype(jnp.float32)[:, None] * emb[None, :]
        return jnp.concatenate([jnp.sin(ang), jnp.cos(ang)], axis=-1)   # (B, FREQ_DIM)

    # --- t = time_embed(time) + d_embed(dt): one small fused Pallas call -----
    def _time_embed(self, time, dt):
        st = self._sinus_time_embed(time)
        sd = self._sinus_time_embed(dt)
        B = st.shape[0]
        d, fd = self.DIM, self.FREQ_DIM
        return pl.pallas_call(
            _time_embed_kernel,
            out_shape=jax.ShapeDtypeStruct((B, d), jnp.float32),
            in_specs=[_full_spec((B, fd)), _full_spec((B, fd)),
                      _full_spec((fd, d)), _full_spec((1, d)),
                      _full_spec((d, d)), _full_spec((1, d)),
                      _full_spec((fd, d)), _full_spec((1, d)),
                      _full_spec((d, d)), _full_spec((1, d))],
            out_specs=_full_spec((B, d)),
        )(st, sd, self.w1_t, self.b1_t, self.w2_t, self.b2_t,
          self.w1_d, self.b1_d, self.w2_d, self.b2_d)

    # --- fused text_embed + input_embed + rope, tiled over time --------------
    def _dit_embed(self, x2d, cond2d, text2d, pos2d):
        Tp = x2d.shape[0]
        tile = self.TILE_T
        d, td, th = self.DIM, self.TEXT_DIM, self.TEXT_HIDDEN
        mp, dh = self.MEL_PAD, self.DIM_HEAD

        row_spec = lambda c: pl.BlockSpec((tile, c), lambda i: (i, 0))
        w_spec = lambda shape: pl.BlockSpec(shape, lambda i: (0,) * len(shape))

        return pl.pallas_call(
            _dit_embed_kernel,
            out_shape=(jax.ShapeDtypeStruct((Tp, d), jnp.float32),
                       jax.ShapeDtypeStruct((Tp, dh), jnp.float32)),
            grid=(Tp // tile,),
            in_specs=[row_spec(mp), row_spec(mp), row_spec(td), row_spec(td),
                      w_spec((td, th)), w_spec((th, td)),
                      w_spec((mp, d)), w_spec((mp, d)), w_spec((td, d)), w_spec((1, d)),
                      w_spec((d, d)), w_spec((1, d)), w_spec((1, dh))],
            out_specs=(row_spec(d), row_spec(dh)),
            compiler_params=pltpu.CompilerParams(
                dimension_semantics=("parallel",),
                vmem_limit_bytes=32 * 1024 * 1024),
        )(x2d, cond2d, text2d, pos2d,
          self.w_t1, self.w_t2,
          self.w_x, self.w_c, self.w_tx, self.b_proj,
          self.w_pos, self.b_pos, self.inv_freq_rep)

    # --- ExportDitEmbed.forward ----------------------------------------------
    def forward(self, x0, cond0, x_lens, time, dt_base_bootstrap, text0):
        B, mel, T = x0.shape
        assert mel == self.MEL_DIM

        # NCL -> time-major once at the boundary; kernels stay (T, C).
        x = jnp.transpose(x0, (0, 2, 1))
        cond = jnp.transpose(cond0, (0, 2, 1))
        text = jnp.transpose(text0, (0, 2, 1))

        # commons.sequence_mask(x_lens, max_length=T)  (trivial comparison)
        mask = jnp.arange(T, dtype=x_lens.dtype)[None, :] < x_lens[:, None]

        # t = time_embed(time) + d_embed(dt_base_bootstrap)
        t_emb = self._time_embed(time, dt_base_bootstrap)

        # pad mel lanes 100 -> 128 (zeroed weight rows => no leakage)
        x = jnp.pad(x, ((0, 0), (0, 0), (0, self.MEL_PAD - mel)))
        cond = jnp.pad(cond, ((0, 0), (0, 0), (0, self.MEL_PAD - mel)))

        # text_embed pads / crops text to seq_len = T along time
        T_text = text.shape[1]
        if T_text < T:
            text = jnp.pad(text, ((0, 0), (0, T - T_text), (0, 0)))
        else:
            text = text[:, :T, :]

        # pad time axis to a tile multiple; slice outputs back to T
        Tp = pl.cdiv(T, self.TILE_T) * self.TILE_T
        pad_t = Tp - T
        if pad_t:
            pad_cfg = ((0, 0), (0, pad_t), (0, 0))
            x = jnp.pad(x, pad_cfg)
            cond = jnp.pad(cond, pad_cfg)
            text = jnp.pad(text, pad_cfg)
        pos2d = self.text_pos_table[:Tp]

        outs = []
        rope = None
        for b in range(B):
            xo, rp = self._dit_embed(x[b], cond[b], text[b], pos2d)
            outs.append(xo[:T])
            if rope is None:
                rope = rp[:T]
        x_out = jnp.stack(outs, axis=0)                   # (B, T, DIM)
        return x_out, t_emb, mask, rope


# ---------------------------------------------------------------------------
if __name__ == "__main__":
    key = jax.random.PRNGKey(0)
    k_model, k_x, k_c, k_txt, k_time, k_dt = jax.random.split(key, 6)

    model = ExportDitEmbedPallas(k_model)

    B, T, T_text = 2, 256, 192
    x0 = jax.random.normal(k_x, (B, model.MEL_DIM, T), jnp.float32)
    cond0 = jax.random.normal(k_c, (B, model.MEL_DIM, T), jnp.float32)
    text0 = jax.random.normal(k_txt, (B, model.TEXT_DIM, T_text), jnp.float32)
    x_lens = jnp.array([230, 256], jnp.int32)
    time = jax.random.uniform(k_time, (B,), jnp.float32)
    dt_base_bootstrap = jax.random.uniform(k_dt, (B,), jnp.float32)

    x_out, t_emb, mask, rope = model.forward(
        x0, cond0, x_lens, time, dt_base_bootstrap, text0)
    x_out = jax.block_until_ready(x_out)
    t_emb = jax.block_until_ready(t_emb)
    mask = jax.block_until_ready(mask)
    rope = jax.block_until_ready(rope)

    assert x_out.shape == (B, T, model.DIM), x_out.shape
    assert t_emb.shape == (B, model.DIM), t_emb.shape
    assert mask.shape == (B, T) and mask.dtype == jnp.bool_, (mask.shape, mask.dtype)
    assert rope.shape == (T, model.DIM_HEAD), rope.shape
    assert int(mask[0].sum()) == 230 and int(mask[1].sum()) == 256
    assert jnp.all(jnp.isfinite(x_out))
    assert jnp.all(jnp.isfinite(t_emb))
    assert jnp.all(jnp.isfinite(rope))
    print("KERNEL_OK")
</pallas_src>

<mosaic_0001>
module attributes {stable_mosaic.version = 11 : i64} {
  func.func @_time_embed_kernel(%arg0: memref<2x256xf32, #tpu.memory_space<vmem>>, %arg1: memref<2x256xf32, #tpu.memory_space<vmem>>, %arg2: memref<256x512xbf16, #tpu.memory_space<vmem>>, %arg3: memref<1x512xf32, #tpu.memory_space<vmem>>, %arg4: memref<512x512xbf16, #tpu.memory_space<vmem>>, %arg5: memref<1x512xf32, #tpu.memory_space<vmem>>, %arg6: memref<256x512xbf16, #tpu.memory_space<vmem>>, %arg7: memref<1x512xf32, #tpu.memory_space<vmem>>, %arg8: memref<512x512xbf16, #tpu.memory_space<vmem>>, %arg9: memref<1x512xf32, #tpu.memory_space<vmem>>, %arg10: memref<2x512xf32, #tpu.memory_space<vmem>>) attributes {dimension_semantics = [], scalar_prefetch = 0 : i64, scratch_operands = 0 : i64, tpu.core_type = #tpu.core_type<tc>} {
    %c0 = arith.constant 0 : index
    %c0_0 = arith.constant 0 : index
    %0 = vector.load %arg0[%c0, %c0_0] : memref<2x256xf32, #tpu.memory_space<vmem>>, vector<2x256xf32>
    %1 = arith.truncf %0 : vector<2x256xf32> to vector<2x256xbf16>
    %c0_1 = arith.constant 0 : index
    %c0_2 = arith.constant 0 : index
    %2 = vector.load %arg2[%c0_1, %c0_2] : memref<256x512xbf16, #tpu.memory_space<vmem>>, vector<256x512xbf16>
    %cst = arith.constant dense<0.000000e+00> : vector<2x512xf32>
    %3 = tpu.matmul %1, %2, %cst {dimension_numbers = #tpu.dot_dimension_numbers<[1], [0], [0], [1], [0, 0, 1, 1], [], []>} : vector<2x256xbf16>, vector<256x512xbf16>, vector<2x512xf32> -> vector<2x512xf32>
    %c0_3 = arith.constant 0 : index
    %c0_4 = arith.constant 0 : index
    %4 = vector.load %arg3[%c0_3, %c0_4] : memref<1x512xf32, #tpu.memory_space<vmem>>, vector<1x512xf32>
    %5 = vector.broadcast %4 : vector<1x512xf32> to vector<2x512xf32>
    %6 = arith.addf %3, %5 : vector<2x512xf32>
    %cst_5 = arith.constant 0.000000e+00 : f32
    %7 = vector.broadcast %cst_5 : f32 to vector<2x512xf32>
    %8 = arith.subf %7, %6 : vector<2x512xf32>
    %9 = math.exp %8 : vector<2x512xf32>
    %cst_6 = arith.constant 1.000000e+00 : f32
    %10 = vector.broadcast %cst_6 : f32 to vector<2x512xf32>
    %11 = arith.addf %10, %9 : vector<2x512xf32>
    %cst_7 = arith.constant 1.000000e+00 : f32
    %12 = vector.broadcast %cst_7 : f32 to vector<2x512xf32>
    %13 = arith.divf %12, %11 : vector<2x512xf32>
    %14 = arith.mulf %6, %13 : vector<2x512xf32>
    %15 = arith.truncf %14 : vector<2x512xf32> to vector<2x512xbf16>
    %c0_8 = arith.constant 0 : index
    %c0_9 = arith.constant 0 : index
    %16 = vector.load %arg4[%c0_8, %c0_9] : memref<512x512xbf16, #tpu.memory_space<vmem>>, vector<512x512xbf16>
    %cst_10 = arith.constant dense<0.000000e+00> : vector<2x512xf32>
    %17 = tpu.matmul %15, %16, %cst_10 {dimension_numbers = #tpu.dot_dimension_numbers<[1], [0], [0], [1], [0, 0, 1, 1], [], []>} : vector<2x512xbf16>, vector<512x512xbf16>, vector<2x512xf32> -> vector<2x512xf32>
    %c0_11 = arith.constant 0 : index
    %c0_12 = arith.constant 0 : index
    %18 = vector.load %arg5[%c0_11, %c0_12] : memref<1x512xf32, #tpu.memory_space<vmem>>, vector<1x512xf32>
    %19 = vector.broadcast %18 : vector<1x512xf32> to vector<2x512xf32>
    %20 = arith.addf %17, %19 : vector<2x512xf32>
    %c0_13 = arith.constant 0 : index
    %c0_14 = arith.constant 0 : index
    %21 = vector.load %arg1[%c0_13, %c0_14] : memref<2x256xf32, #tpu.memory_space<vmem>>, vector<2x256xf32>
    %22 = arith.truncf %21 : vector<2x256xf32> to vector<2x256xbf16>
    %c0_15 = arith.constant 0 : index
    %c0_16 = arith.constant 0 : index
    %23 = vector.load %arg6[%c0_15, %c0_16] : memref<256x512xbf16, #tpu.memory_space<vmem>>, vector<256x512xbf16>
    %cst_17 = arith.constant dense<0.000000e+00> : vector<2x512xf32>
    %24 = tpu.matmul %22, %23, %cst_17 {dimension_numbers = #tpu.dot_dimension_numbers<[1], [0], [0], [1], [0, 0, 1, 1], [], []>} : vector<2x256xbf16>, vector<256x512xbf16>, vector<2x512xf32> -> vector<2x512xf32>
    %c0_18 = arith.constant 0 : index
    %c0_19 = arith.constant 0 : index
    %25 = vector.load %arg7[%c0_18, %c0_19] : memref<1x512xf32, #tpu.memory_space<vmem>>, vector<1x512xf32>
    %26 = vector.broadcast %25 : vector<1x512xf32> to vector<2x512xf32>
    %27 = arith.addf %24, %26 : vector<2x512xf32>
    %cst_20 = arith.constant 0.000000e+00 : f32
    %28 = vector.broadcast %cst_20 : f32 to vector<2x512xf32>
    %29 = arith.subf %28, %27 : vector<2x512xf32>
    %30 = math.exp %29 : vector<2x512xf32>
    %cst_21 = arith.constant 1.000000e+00 : f32
    %31 = vector.broadcast %cst_21 : f32 to vector<2x512xf32>
    %32 = arith.addf %31, %30 : vector<2x512xf32>
    %cst_22 = arith.constant 1.000000e+00 : f32
    %33 = vector.broadcast %cst_22 : f32 to vector<2x512xf32>
    %34 = arith.divf %33, %32 : vector<2x512xf32>
    %35 = arith.mulf %27, %34 : vector<2x512xf32>
    %36 = arith.truncf %35 : vector<2x512xf32> to vector<2x512xbf16>
    %c0_23 = arith.constant 0 : index
    %c0_24 = arith.constant 0 : index
    %37 = vector.load %arg8[%c0_23, %c0_24] : memref<512x512xbf16, #tpu.memory_space<vmem>>, vector<512x512xbf16>
    %cst_25 = arith.constant dense<0.000000e+00> : vector<2x512xf32>
    %38 = tpu.matmul %36, %37, %cst_25 {dimension_numbers = #tpu.dot_dimension_numbers<[1], [0], [0], [1], [0, 0, 1, 1], [], []>} : vector<2x512xbf16>, vector<512x512xbf16>, vector<2x512xf32> -> vector<2x512xf32>
    %c0_26 = arith.constant 0 : index
    %c0_27 = arith.constant 0 : index
    %39 = vector.load %arg9[%c0_26, %c0_27] : memref<1x512xf32, #tpu.memory_space<vmem>>, vector<1x512xf32>
    %40 = vector.broadcast %39 : vector<1x512xf32> to vector<2x512xf32>
    %41 = arith.addf %38, %40 : vector<2x512xf32>
    %42 = arith.addf %20, %41 : vector<2x512xf32>
    %c0_28 = arith.constant 0 : index
    %c0_29 = arith.constant 0 : index
    %43 = vector.load %arg10[%c0_28, %c0_29] : memref<2x512xf32, #tpu.memory_space<vmem>>, vector<2x512xf32>
    tpu.vector_store %arg10[%c0_28, %c0_29], %42 {strides = array<i32>} : memref<2x512xf32, #tpu.memory_space<vmem>>, vector<2x512xf32>,
    return
  }
}

</mosaic_0001>

<llo_original>
// kernel: tpu_custom_call.1
$region0: #{tpu_custom_call.1}
  #allocation0 [shape = 'u32[]', space=smem, size = 0x4, offset = 0x4, fixed_abs, tag = 'smem constant byte address 0x4 - core index']
  #allocation1 [shape = 'u32[72,128]{1,0:T(1,128)}', space=vmem, size = 0x9000, scoped, tag = 'internal scratch']
  %s0 = inlined_call_operand.hbm [shape: f32[2,256], index: 0, kind: input, shape index: {}]
  %s1 = inlined_call_operand.hbm [shape: f32[2,256], index: 1, kind: input, shape index: {}]
  %s2 = inlined_call_operand.hbm [shape: bf16[256,512], index: 2, kind: input, shape index: {}]
  %s3 = inlined_call_operand.hbm [shape: f32[1,512], index: 3, kind: input, shape index: {}]
  %s4 = inlined_call_operand.hbm [shape: bf16[512,512], index: 4, kind: input, shape index: {}]
  %s5 = inlined_call_operand.vmem [shape: f32[1,512], index: 5, kind: input, shape index: {}]
  %s6 = inlined_call_operand.hbm [shape: bf16[256,512], index: 6, kind: input, shape index: {}]
  %s7 = inlined_call_operand.hbm [shape: f32[1,512], index: 7, kind: input, shape index: {}]
  %s8 = inlined_call_operand.hbm [shape: bf16[512,512], index: 8, kind: input, shape index: {}]
  %s9 = inlined_call_operand.vmem [shape: f32[1,512], index: 9, kind: input, shape index: {}]
  %s10 = inlined_call_operand.hbm [shape: f32[2,512], index: 10, kind: output, shape index: {}]
  %s11 = sld [smem:[#allocation0]]
  $region82: #{tpu_custom_call.1} parent=0
    _
  %s13 = ssub.s32 1, %s11
  %s14 = scalar_select 0, %s13, %s11
  $region1: #{tpu_custom_call.1} parent=0
    #allocation2 [shape = 'u8[2048]{0}', space=vmem, size = 0x800, scoped, tag = 'input window, operand 0, single buffered']
    #allocation3 [shape = 's32[1]{0}', space=sflag, size = 0x4, scoped, tag = 'scoped memory for tpu_custom_call.1']
    #allocation4 [shape = 's32[1]{0}', space=sflag, size = 0x4, scoped, tag = 'scoped memory for tpu_custom_call.1']
    #allocation5 [shape = 'u8[2048]{0}', space=vmem, size = 0x800, scoped, tag = 'input window, operand 1, single buffered']
    #allocation6 [shape = 's32[1]{0}', space=sflag, size = 0x4, scoped, tag = 'scoped memory for tpu_custom_call.1']
    #allocation7 [shape = 'u8[262144]{0}', space=vmem, size = 0x40000, scoped, tag = 'input window, operand 2, single buffered']
    #allocation8 [shape = 'u8[2048]{0}', space=vmem, size = 0x800, scoped, tag = 'input window, operand 3, single buffered']
    #allocation9 [shape = 's32[1]{0}', space=sflag, size = 0x4, scoped, tag = 'scoped memory for tpu_custom_call.1']
    #allocation10 [shape = 'u8[524288]{0}', space=vmem, size = 0x80000, scoped, tag = 'input window, operand 4, single buffered']
    #allocation11 [shape = 'u8[262144]{0}', space=vmem, size = 0x40000, scoped, tag = 'input window, operand 6, single buffered']
    #allocation12 [shape = 's32[1]{0}', space=sflag, size = 0x4, scoped, tag = 'scoped memory for tpu_custom_call.1']
    #allocation13 [shape = 'u8[2048]{0}', space=vmem, size = 0x800, scoped, tag = 'input window, operand 7, single buffered']
    #allocation14 [shape = 'u8[524288]{0}', space=vmem, size = 0x80000, scoped, tag = 'input window, operand 8, single buffered']
    #allocation15 [shape = 's32[1]{0}', space=sflag, size = 0x4, scoped, tag = 'scoped memory for tpu_custom_call.1']
    #allocation16 [shape = 'u8[4096]{0}', space=vmem, size = 0x1000, scoped, tag = 'output window, operand 0, single buffered']
    %15 = vsyncpa [#allocation3], 0
    %16 = vsyncpa [#allocation6], 0
    %17 = vsyncpa [#allocation9], 0
    %18 = vsyncpa [#allocation12], 0
    %19 = vsyncpa [#allocation15], 0
    %20 = vsyncpa [#allocation4], 0
    // Predicated region
    $region2: #{tpu_custom_call.1} parent=1 // pred_check
      _
    $region3: #{tpu_custom_call.1} parent=1 // pred_check_branch
      %22 = sbr.rel (0) target = $region5
    $region4: #{tpu_custom_call.1} parent=1 // pred_region
      %24 = vsyncadd [#allocation3], 0
      %s26 = sshll.u32 %s0, 4
      %s27 = int_to_ptr.hbm [resolvable:$true] %s26
      %s28 = sshll.u32 [#allocation2], 4
      %s29 = int_to_ptr.vmem [resolvable:$true] %s28
      %31 = dma.hbm_to_vmem [thread:$0]  %s27, 64, %s29, [#allocation3]
    $region5: #{tpu_custom_call.1} parent=1 // pred_fallthru
      _
    // Predicated region
    $region6: #{tpu_custom_call.1} parent=1 // pred_check
      _
    $region7: #{tpu_custom_call.1} parent=1 // pred_check_branch
      %33 = sbr.rel (0) target = $region9
    $region8: #{tpu_custom_call.1} parent=1 // pred_region
      %35 = vsyncadd [#allocation6], 0
      %s37 = sshll.u32 %s1, 4
      %s38 = int_to_ptr.hbm [resolvable:$true] %s37
      %s39 = sshll.u32 [#allocation5], 4
      %s40 = int_to_ptr.vmem [resolvable:$true] %s39
      %42 = dma.hbm_to_vmem [thread:$0]  %s38, 64, %s40, [#allocation6]
    $region9: #{tpu_custom_call.1} parent=1 // pred_fallthru
      _
    // Predicated region
    $region10: #{tpu_custom_call.1} parent=1 // pred_check
      _
    $region11: #{tpu_custom_call.1} parent=1 // pred_check_branch
      %44 = sbr.rel (0) target = $region13
    $region12: #{tpu_custom_call.1} parent=1 // pred_region
      %46 = vsyncadd [#allocation6], 0
      %s47 = sshll.u32 %s2, 4
      %s48 = int_to_ptr.hbm [resolvable:$true] %s47
      %s49 = sshll.u32 [#allocation7], 4
      %s50 = int_to_ptr.vmem [resolvable:$true] %s49
      %55 = dma.hbm_to_vmem [thread:$0]  %s48, 8192, %s50, [#allocation6], 256, 256, 16
    $region13: #{tpu_custom_call.1} parent=1 // pred_fallthru
      _
    // Predicated region
    $region14: #{tpu_custom_call.1} parent=1 // pred_check
      _
    $region15: #{tpu_custom_call.1} parent=1 // pred_check_branch
      %57 = sbr.rel (0) target = $region17
    $region16: #{tpu_custom_call.1} parent=1 // pred_region
      %59 = vsyncadd [#allocation9], 0
      %s61 = sshll.u32 %s3, 4
      %s62 = int_to_ptr.hbm [resolvable:$true] %s61
      %s63 = sshll.u32 [#allocation8], 4
      %s64 = int_to_ptr.vmem [resolvable:$true] %s63
      %66 = dma.hbm_to_vmem [thread:$0]  %s62, 64, %s64, [#allocation9]
    $region17: #{tpu_custom_call.1} parent=1 // pred_fallthru
      _
    // Predicated region
    $region18: #{tpu_custom_call.1} parent=1 // pred_check
      _
    $region19: #{tpu_custom_call.1} parent=1 // pred_check_branch
      %68 = sbr.rel (0) target = $region21
    $region20: #{tpu_custom_call.1} parent=1 // pred_region
      %70 = vsyncadd [#allocation9], 0
      %s71 = sshll.u32 %s4, 4
      %s72 = int_to_ptr.hbm [resolvable:$true] %s71
      %s73 = sshll.u32 [#allocation10], 4
      %s74 = int_to_ptr.vmem [resolvable:$true] %s73
      %79 = dma.hbm_to_vmem [thread:$0]  %s72, 16384, %s74, [#allocation9], 256, 256, 16
    $region21: #{tpu_custom_call.1} parent=1 // pred_fallthru
      _
    // Predicated region
    $region22: #{tpu_custom_call.1} parent=1 // pred_check
      _
    $region23: #{tpu_custom_call.1} parent=1 // pred_check_branch
      %81 = sbr.rel (0) target = $region25
    $region24: #{tpu_custom_call.1} parent=1 // pred_region
      _
    $region25: #{tpu_custom_call.1} parent=1 // pred_fallthru
      _
    // Predicated region
    $region26: #{tpu_custom_call.1} parent=1 // pred_check
      _
    $region27: #{tpu_custom_call.1} parent=1 // pred_check_branch
      %83 = sbr.rel (0) target = $region29
    $region28: #{tpu_custom_call.1} parent=1 // pred_region
      %85 = vsyncadd [#allocation12], 0
      %s86 = sshll.u32 %s6, 4
      %s87 = int_to_ptr.hbm [resolvable:$true] %s86
      %s88 = sshll.u32 [#allocation11], 4
      %s89 = int_to_ptr.vmem [resolvable:$true] %s88
      %94 = dma.hbm_to_vmem [thread:$0]  %s87, 8192, %s89, [#allocation12], 256, 256, 16
    $region29: #{tpu_custom_call.1} parent=1 // pred_fallthru
      _
    // Predicated region
    $region30: #{tpu_custom_call.1} parent=1 // pred_check
      _
    $region31: #{tpu_custom_call.1} parent=1 // pred_check_branch
      %96 = sbr.rel (0) target = $region33
    $region32: #{tpu_custom_call.1} parent=1 // pred_region
      %98 = vsyncadd [#allocation12], 0
      %s100 = sshll.u32 %s7, 4
      %s101 = int_to_ptr.hbm [resolvable:$true] %s100
      %s102 = sshll.u32 [#allocation13], 4
      %s103 = int_to_ptr.vmem [resolvable:$true] %s102
      %105 = dma.hbm_to_vmem [thread:$0]  %s101, 64, %s103, [#allocation12]
    $region33: #{tpu_custom_call.1} parent=1 // pred_fallthru
      _
    // Predicated region
    $region34: #{tpu_custom_call.1} parent=1 // pred_check
      _
    $region35: #{tpu_custom_call.1} parent=1 // pred_check_branch
      %107 = sbr.rel (0) target = $region37
    $region36: #{tpu_custom_call.1} parent=1 // pred_region
      %109 = vsyncadd [#allocation15], 0
      %s110 = sshll.u32 %s8, 4
      %s111 = int_to_ptr.hbm [resolvable:$true] %s110
      %s112 = sshll.u32 [#allocation14], 4
      %s113 = int_to_ptr.vmem [resolvable:$true] %s112
      %118 = dma.hbm_to_vmem [thread:$0]  %s111, 16384, %s113, [#allocation15], 256, 256, 16
    $region37: #{tpu_custom_call.1} parent=1 // pred_fallthru
      _
    // Predicated region
    $region38: #{tpu_custom_call.1} parent=1 // pred_check
      _
    $region39: #{tpu_custom_call.1} parent=1 // pred_check_branch
      %120 = sbr.rel (0) target = $region41
    $region40: #{tpu_custom_call.1} parent=1 // pred_region
      _
    $region41: #{tpu_custom_call.1} parent=1 // pred_fallthru
      _
    // Predicated region
    $region42: #{tpu_custom_call.1} parent=1 // pred_check
      _
    $region43: #{tpu_custom_call.1} parent=1 // pred_check_branch
      %122 = sbr.rel (0) target = $region45
    $region44: #{tpu_custom_call.1} parent=1 // pred_region
      %124 = dma.done [#allocation3], 64
    $region45: #{tpu_custom_call.1} parent=1 // pred_fallthru
      _
    // Predicated region
    $region46: #{tpu_custom_call.1} parent=1 // pred_check
      _
    $region47: #{tpu_custom_call.1} parent=1 // pred_check_branch
      %126 = sbr.rel (0) target = $region49
    $region48: #{tpu_custom_call.1} parent=1 // pred_region
      %128 = dma.done [#allocation6], 64
    $region49: #{tpu_custom_call.1} parent=1 // pred_fallthru
      _
    // Predicated region
    $region50: #{tpu_custom_call.1} parent=1 // pred_check
      _
    $region51: #{tpu_custom_call.1} parent=1 // pred_check_branch
      %130 = sbr.rel (0) target = $region53
    $region52: #{tpu_custom_call.1} parent=1 // pred_region
      %132 = dma.done [#allocation6], 8192
    $region53: #{tpu_custom_call.1} parent=1 // pred_fallthru
      _
    // Predicated region
    $region54: #{tpu_custom_call.1} parent=1 // pred_check
      _
    $region55: #{tpu_custom_call.1} parent=1 // pred_check_branch
      %134 = sbr.rel (0) target = $region57
    $region56: #{tpu_custom_call.1} parent=1 // pred_region
      %136 = dma.done [#allocation9], 64
    $region57: #{tpu_custom_call.1} parent=1 // pred_fallthru
      _
    // Predicated region
    $region58: #{tpu_custom_call.1} parent=1 // pred_check
      _
    $region59: #{tpu_custom_call.1} parent=1 // pred_check_branch
      %138 = sbr.rel (0) target = $region61
    $region60: #{tpu_custom_call.1} parent=1 // pred_region
      %140 = dma.done [#allocation9], 16384
    $region61: #{tpu_custom_call.1} parent=1 // pred_fallthru
      _
    // Predicated region
    $region62: #{tpu_custom_call.1} parent=1 // pred_check
      _
    $region63: #{tpu_custom_call.1} parent=1 // pred_check_branch
      %142 = sbr.rel (0) target = $region65
    $region64: #{tpu_custom_call.1} parent=1 // pred_region
      %144 = dma.done [#allocation12], 8192
    $region65: #{tpu_custom_call.1} parent=1 // pred_fallthru
      _
    // Predicated region
    $region66: #{tpu_custom_call.1} parent=1 // pred_check
      _
    $region67: #{tpu_custom_call.1} parent=1 // pred_check_branch
      %146 = sbr.rel (0) target = $region69
    $region68: #{tpu_custom_call.1} parent=1 // pred_region
      %148 = dma.done [#allocation12], 64
    $region69: #{tpu_custom_call.1} parent=1 // pred_fallthru
      _
    // Predicated region
    $region70: #{tpu_custom_call.1} parent=1 // pred_check
      _
    $region71: #{tpu_custom_call.1} parent=1 // pred_check_branch
      %150 = sbr.rel (0) target = $region73
    $region72: #{tpu_custom_call.1} parent=1 // pred_region
      %152 = dma.done [#allocation15], 16384
    $region73: #{tpu_custom_call.1} parent=1 // pred_fallthru
      _
    %v153 = vld [vmem:[#allocation2] sm:$0xf]
    %155 = vst [vmem:[#allocation1] ss:$4 sm:$0xff] %v153
    %v156 = vld.sshfl [vmem:[#allocation1] sm:$0xff pattern:$0x73625140]
    %v157 = vld.sshfl [vmem:[#allocation1 + $0x8] sm:$0xff pattern:$0x73625140]
    %v160 = vpack.c.bf16 %v156, %v156
    %v161 = vpack.c.bf16 %v157, %v157
    %v162 = vld [vmem:[#allocation7] sm:$0xff]
    %v163 = vld [vmem:[#allocation7 + $0x8] sm:$0xff]
    %v164 = vld [vmem:[#allocation7 + $0x10] sm:$0xff]
    %v165 = vld [vmem:[#allocation7 + $0x18] sm:$0xff]
    %v166 = vld [vmem:[#allocation7 + $0x20] sm:$0xff]
    %v167 = vld [vmem:[#allocation7 + $0x28] sm:$0xff]
    %v168 = vld [vmem:[#allocation7 + $0x30] sm:$0xff]
    %v169 = vld [vmem:[#allocation7 + $0x38] sm:$0xff]
    %v170 = vld [vmem:[#allocation7 + $0x40] sm:$0xff]
    %v171 = vld [vmem:[#allocation7 + $0x48] sm:$0xff]
    %v172 = vld [vmem:[#allocation7 + $0x50] sm:$0xff]
    %v173 = vld [vmem:[#allocation7 + $0x58] sm:$0xff]
    %v174 = vld [vmem:[#allocation7 + $0x60] sm:$0xff]
    %v175 = vld [vmem:[#allocation7 + $0x68] sm:$0xff]
    %v176 = vld [vmem:[#allocation7 + $0x70] sm:$0xff]
    %v177 = vld [vmem:[#allocation7 + $0x78] sm:$0xff]
    %v178 = vld [vmem:[#allocation7 + $0x80] sm:$0xff]
    %v179 = vld [vmem:[#allocation7 + $0x88] sm:$0xff]
    %v180 = vld [vmem:[#allocation7 + $0x90] sm:$0xff]
    %v181 = vld [vmem:[#allocation7 + $0x98] sm:$0xff]
    %v182 = vld [vmem:[#allocation7 + $0xa0] sm:$0xff]
    %v183 = vld [vmem:[#allocation7 + $0xa8] sm:$0xff]
    %v184 = vld [vmem:[#allocation7 + $0xb0] sm:$0xff]
    %v185 = vld [vmem:[#allocation7 + $0xb8] sm:$0xff]
    %v186 = vld [vmem:[#allocation7 + $0xc0] sm:$0xff]
    %v187 = vld [vmem:[#allocation7 + $0xc8] sm:$0xff]
    %v188 = vld [vmem:[#allocation7 + $0xd0] sm:$0xff]
    %v189 = vld [vmem:[#allocation7 + $0xd8] sm:$0xff]
    %v190 = vld [vmem:[#allocation7 + $0xe0] sm:$0xff]
    %v191 = vld [vmem:[#allocation7 + $0xe8] sm:$0xff]
    %v192 = vld [vmem:[#allocation7 + $0xf0] sm:$0xff]
    %v193 = vld [vmem:[#allocation7 + $0xf8] sm:$0xff]
    %v194 = vld [vmem:[#allocation7 + $0x100] sm:$0xff]
    %v195 = vld [vmem:[#allocation7 + $0x108] sm:$0xff]
    %v196 = vld [vmem:[#allocation7 + $0x110] sm:$0xff]
    %v197 = vld [vmem:[#allocation7 + $0x118] sm:$0xff]
    %v198 = vld [vmem:[#allocation7 + $0x120] sm:$0xff]
    %v199 = vld [vmem:[#allocation7 + $0x128] sm:$0xff]
    %v200 = vld [vmem:[#allocation7 + $0x130] sm:$0xff]
    %v201 = vld [vmem:[#allocation7 + $0x138] sm:$0xff]
    %v202 = vld [vmem:[#allocation7 + $0x140] sm:$0xff]
    %v203 = vld [vmem:[#allocation7 + $0x148] sm:$0xff]
    %v204 = vld [vmem:[#allocation7 + $0x150] sm:$0xff]
    %v205 = vld [vmem:[#allocation7 + $0x158] sm:$0xff]
    %v206 = vld [vmem:[#allocation7 + $0x160] sm:$0xff]
    %v207 = vld [vmem:[#allocation7 + $0x168] sm:$0xff]
    %v208 = vld [vmem:[#allocation7 + $0x170] sm:$0xff]
    %v209 = vld [vmem:[#allocation7 + $0x178] sm:$0xff]
    %v210 = vld [vmem:[#allocation7 + $0x180] sm:$0xff]
    %v211 = vld [vmem:[#allocation7 + $0x188] sm:$0xff]
    %v212 = vld [vmem:[#allocation7 + $0x190] sm:$0xff]
    %v213 = vld [vmem:[#allocation7 + $0x198] sm:$0xff]
    %v214 = vld [vmem:[#allocation7 + $0x1a0] sm:$0xff]
    %v215 = vld [vmem:[#allocation7 + $0x1a8] sm:$0xff]
    %v216 = vld [vmem:[#allocation7 + $0x1b0] sm:$0xff]
    %v217 = vld [vmem:[#allocation7 + $0x1b8] sm:$0xff]
    %v218 = vld [vmem:[#allocation7 + $0x1c0] sm:$0xff]
    %v219 = vld [vmem:[#allocation7 + $0x1c8] sm:$0xff]
    %v220 = vld [vmem:[#allocation7 + $0x1d0] sm:$0xff]
    %v221 = vld [vmem:[#allocation7 + $0x1d8] sm:$0xff]
    %v222 = vld [vmem:[#allocation7 + $0x1e0] sm:$0xff]
    %v223 = vld [vmem:[#allocation7 + $0x1e8] sm:$0xff]
    %v224 = vld [vmem:[#allocation7 + $0x1f0] sm:$0xff]
    %v225 = vld [vmem:[#allocation7 + $0x1f8] sm:$0xff]
    %v226 = vld [vmem:[#allocation8] sm:$0xf]
    %v228 = vperm.slane %v226, 0
    %v229 = vperm.slane %v226, 1
    %v230 = vperm.slane %v226, 2
    %v231 = vperm.slane %v226, 3
    %v300 = vunpack.c.l.b16 %v162
    %v301 = vunpack.c.h.b16 %v162
    %v302 = vunpack.c.l.b16 %v163
    %v303 = vunpack.c.h.b16 %v163
    %v304 = vunpack.c.l.b16 %v164
    %v305 = vunpack.c.h.b16 %v164
    %v306 = vunpack.c.l.b16 %v165
    %v307 = vunpack.c.h.b16 %v165
    %v308 = vunpack.c.l.b16 %v166
    %v309 = vunpack.c.h.b16 %v166
    %v310 = vunpack.c.l.b16 %v167
    %v311 = vunpack.c.h.b16 %v167
    %v312 = vunpack.c.l.b16 %v168
    %v313 = vunpack.c.h.b16 %v168
    %v314 = vunpack.c.l.b16 %v169
    %v315 = vunpack.c.h.b16 %v169
    %v316 = vunpack.c.l.b16 %v170
    %v317 = vunpack.c.h.b16 %v170
    %v318 = vunpack.c.l.b16 %v171
    %v319 = vunpack.c.h.b16 %v171
    %v320 = vunpack.c.l.b16 %v172
    %v321 = vunpack.c.h.b16 %v172
    %v322 = vunpack.c.l.b16 %v173
    %v323 = vunpack.c.h.b16 %v173
    %v324 = vunpack.c.l.b16 %v174
    %v325 = vunpack.c.h.b16 %v174
    %v326 = vunpack.c.l.b16 %v175
    %v327 = vunpack.c.h.b16 %v175
    %v328 = vunpack.c.l.b16 %v176
    %v329 = vunpack.c.h.b16 %v176
    %v330 = vunpack.c.l.b16 %v177
    %v331 = vunpack.c.h.b16 %v177
    %v332 = vunpack.c.l.b16 %v178
    %v333 = vunpack.c.h.b16 %v178
    %v334 = vunpack.c.l.b16 %v179
    %v335 = vunpack.c.h.b16 %v179
    %v336 = vunpack.c.l.b16 %v180
    %v337 = vunpack.c.h.b16 %v180
    %v338 = vunpack.c.l.b16 %v181
    %v339 = vunpack.c.h.b16 %v181
    %v340 = vunpack.c.l.b16 %v182
    %v341 = vunpack.c.h.b16 %v182
    %v342 = vunpack.c.l.b16 %v183
    %v343 = vunpack.c.h.b16 %v183
    %v344 = vunpack.c.l.b16 %v184
    %v345 = vunpack.c.h.b16 %v184
    %v346 = vunpack.c.l.b16 %v185
    %v347 = vunpack.c.h.b16 %v185
    %v348 = vunpack.c.l.b16 %v186
    %v349 = vunpack.c.h.b16 %v186
    %v350 = vunpack.c.l.b16 %v187
    %v351 = vunpack.c.h.b16 %v187
    %v352 = vunpack.c.l.b16 %v188
    %v353 = vunpack.c.h.b16 %v188
    %v354 = vunpack.c.l.b16 %v189
    %v355 = vunpack.c.h.b16 %v189
    %v356 = vunpack.c.l.b16 %v190
    %v357 = vunpack.c.h.b16 %v190
    %v358 = vunpack.c.l.b16 %v191
    %v359 = vunpack.c.h.b16 %v191
    %v360 = vunpack.c.l.b16 %v192
    %v361 = vunpack.c.h.b16 %v192
    %v362 = vunpack.c.l.b16 %v193
    %v363 = vunpack.c.h.b16 %v193
    %v364 = vunpack.c.l.b16 %v194
    %v365 = vunpack.c.h.b16 %v194
    %v366 = vunpack.c.l.b16 %v195
    %v367 = vunpack.c.h.b16 %v195
    %v368 = vunpack.c.l.b16 %v196
    %v369 = vunpack.c.h.b16 %v196
    %v370 = vunpack.c.l.b16 %v197
    %v371 = vunpack.c.h.b16 %v197
    %v372 = vunpack.c.l.b16 %v198
    %v373 = vunpack.c.h.b16 %v198
    %v374 = vunpack.c.l.b16 %v199
    %v375 = vunpack.c.h.b16 %v199
    %v376 = vunpack.c.l.b16 %v200
    %v377 = vunpack.c.h.b16 %v200
    %v378 = vunpack.c.l.b16 %v201
    %v379 = vunpack.c.h.b16 %v201
    %v380 = vunpack.c.l.b16 %v202
    %v381 = vunpack.c.h.b16 %v202
    %v382 = vunpack.c.l.b16 %v203
    %v383 = vunpack.c.h.b16 %v203
    %v384 = vunpack.c.l.b16 %v204
    %v385 = vunpack.c.h.b16 %v204
    %v386 = vunpack.c.l.b16 %v205
    %v387 = vunpack.c.h.b16 %v205
    %v388 = vunpack.c.l.b16 %v206
    %v389 = vunpack.c.h.b16 %v206
    %v390 = vunpack.c.l.b16 %v207
    %v391 = vunpack.c.h.b16 %v207
    %v392 = vunpack.c.l.b16 %v208
    %v393 = vunpack.c.h.b16 %v208
    %v394 = vunpack.c.l.b16 %v209
    %v395 = vunpack.c.h.b16 %v209
    %v396 = vunpack.c.l.b16 %v210
    %v397 = vunpack.c.h.b16 %v210
    %v398 = vunpack.c.l.b16 %v211
    %v399 = vunpack.c.h.b16 %v211
    %v400 = vunpack.c.l.b16 %v212
    %v401 = vunpack.c.h.b16 %v212
    %v402 = vunpack.c.l.b16 %v213
    %v403 = vunpack.c.h.b16 %v213
    %v404 = vunpack.c.l.b16 %v214
    %v405 = vunpack.c.h.b16 %v214
    %v406 = vunpack.c.l.b16 %v215
    %v407 = vunpack.c.h.b16 %v215
    %v408 = vunpack.c.l.b16 %v216
    %v409 = vunpack.c.h.b16 %v216
    %v410 = vunpack.c.l.b16 %v217
    %v411 = vunpack.c.h.b16 %v217
    %v412 = vunpack.c.l.b16 %v218
    %v413 = vunpack.c.h.b16 %v218
    %v414 = vunpack.c.l.b16 %v219
    %v415 = vunpack.c.h.b16 %v219
    %v416 = vunpack.c.l.b16 %v220
    %v417 = vunpack.c.h.b16 %v220
    %v418 = vunpack.c.l.b16 %v221
    %v419 = vunpack.c.h.b16 %v221
    %v420 = vunpack.c.l.b16 %v222
    %v421 = vunpack.c.h.b16 %v222
    %v422 = vunpack.c.l.b16 %v223
    %v423 = vunpack.c.h.b16 %v223
    %v424 = vunpack.c.l.b16 %v224
    %v425 = vunpack.c.h.b16 %v224
    %v426 = vunpack.c.l.b16 %v225
    %v427 = vunpack.c.h.b16 %v225
    %v428 = vpack.c.b16 %v304, %v300
    %v429 = vpack.c.b16 %v305, %v301
    %v430 = vpack.c.b16 %v306, %v302
    %v431 = vpack.c.b16 %v307, %v303
    %v432 = vpack.c.b16 %v312, %v308
    %v433 = vpack.c.b16 %v313, %v309
    %v434 = vpack.c.b16 %v314, %v310
    %v435 = vpack.c.b16 %v315, %v311
    %v436 = vpack.c.b16 %v320, %v316
    %v437 = vpack.c.b16 %v321, %v317
    %v438 = vpack.c.b16 %v322, %v318
    %v439 = vpack.c.b16 %v323, %v319
    %v440 = vpack.c.b16 %v328, %v324
    %v441 = vpack.c.b16 %v329, %v325
    %v442 = vpack.c.b16 %v330, %v326
    %v443 = vpack.c.b16 %v331, %v327
    %v444 = vpack.c.b16 %v336, %v332
    %v445 = vpack.c.b16 %v337, %v333
    %v446 = vpack.c.b16 %v338, %v334
    %v447 = vpack.c.b16 %v339, %v335
    %v448 = vpack.c.b16 %v344, %v340
    %v449 = vpack.c.b16 %v345, %v341
    %v450 = vpack.c.b16 %v346, %v342
    %v451 = vpack.c.b16 %v347, %v343
    %v452 = vpack.c.b16 %v352, %v348
    %v453 = vpack.c.b16 %v353, %v349
    %v454 = vpack.c.b16 %v354, %v350
    %v455 = vpack.c.b16 %v355, %v351
    %v456 = vpack.c.b16 %v360, %v356
    %v457 = vpack.c.b16 %v361, %v357
    %v458 = vpack.c.b16 %v362, %v358
    %v459 = vpack.c.b16 %v363, %v359
    %v460 = vpack.c.b16 %v368, %v364
    %v461 = vpack.c.b16 %v369, %v365
    %v462 = vpack.c.b16 %v370, %v366
    %v463 = vpack.c.b16 %v371, %v367
    %v464 = vpack.c.b16 %v376, %v372
    %v465 = vpack.c.b16 %v377, %v373
    %v466 = vpack.c.b16 %v378, %v374
    %v467 = vpack.c.b16 %v379, %v375
    %v468 = vpack.c.b16 %v384, %v380
    %v469 = vpack.c.b16 %v385, %v381
    %v470 = vpack.c.b16 %v386, %v382
    %v471 = vpack.c.b16 %v387, %v383
    %v472 = vpack.c.b16 %v392, %v388
    %v473 = vpack.c.b16 %v393, %v389
    %v474 = vpack.c.b16 %v394, %v390
    %v475 = vpack.c.b16 %v395, %v391
    %v476 = vpack.c.b16 %v400, %v396
    %v477 = vpack.c.b16 %v401, %v397
    %v478 = vpack.c.b16 %v402, %v398
    %v479 = vpack.c.b16 %v403, %v399
    %v480 = vpack.c.b16 %v408, %v404
    %v481 = vpack.c.b16 %v409, %v405
    %v482 = vpack.c.b16 %v410, %v406
    %v483 = vpack.c.b16 %v411, %v407
    %v484 = vpack.c.b16 %v416, %v412
    %v485 = vpack.c.b16 %v417, %v413
    %v486 = vpack.c.b16 %v418, %v414
    %v487 = vpack.c.b16 %v419, %v415
    %v488 = vpack.c.b16 %v424, %v420
    %v489 = vpack.c.b16 %v425, %v421
    %v490 = vpack.c.b16 %v426, %v422
    %v491 = vpack.c.b16 %v427, %v423
    %556 = vmatpush.bf16.msra.mxu0 %v456
    %557 = vmatpush.bf16.msra.mxu0 %v452
    %558 = vmatpush.bf16.msra.mxu0 %v448
    %559 = vmatpush.bf16.msra.mxu0 %v444
    %560 = vmatpush.bf16.msra.mxu0 %v440
    %561 = vmatpush.bf16.msra.mxu0 %v436
    %562 = vmatpush.bf16.msra.mxu0 %v432
    %563 = vmatpush.bf16.msra.mxu0 %v428
    %564 = vmatmul.bf16.gmra.mxu0 %v160
    %v565 = vpop.f32.mrf.mxu0
    %v566 = vadd.f32 %v228, %v565
    %v567 = vpop.f32.mrf.mxu0
    %568 = vdwg.mxu0
    %569 = vmatpush.bf16.msra.mxu0 %v488
    %570 = vmatpush.bf16.msra.mxu0 %v484
    %571 = vmatpush.bf16.msra.mxu0 %v480
    %572 = vmatpush.bf16.msra.mxu0 %v476
    %573 = vmatpush.bf16.msra.mxu0 %v472
    %574 = vmatpush.bf16.msra.mxu0 %v468
    %575 = vmatpush.bf16.msra.mxu0 %v464
    %576 = vmatpush.bf16.msra.mxu0 %v460
    %577 = vmatmul.bf16.gmra.mxu0 %v161
    %v578 = vpop.f32.mrf.mxu0
    %v579 = vadd.f32 %v566, %v578
    %v580 = vpop.f32.mrf.mxu0
    %581 = vdwg.mxu0
    %582 = vmatpush.bf16.msra.mxu0 %v457
    %583 = vmatpush.bf16.msra.mxu0 %v453
    %584 = vmatpush.bf16.msra.mxu0 %v449
    %585 = vmatpush.bf16.msra.mxu0 %v445
    %586 = vmatpush.bf16.msra.mxu0 %v441
    %587 = vmatpush.bf16.msra.mxu0 %v437
    %588 = vmatpush.bf16.msra.mxu0 %v433
    %589 = vmatpush.bf16.msra.mxu0 %v429
    %590 = vmatmul.bf16.gmra.mxu0 %v160
    %v591 = vpop.f32.mrf.mxu0
    %v592 = vadd.f32 %v229, %v591
    %v593 = vpop.f32.mrf.mxu0
    %594 = vdwg.mxu0
    %595 = vmatpush.bf16.msra.mxu0 %v489
    %596 = vmatpush.bf16.msra.mxu0 %v485
    %597 = vmatpush.bf16.msra.mxu0 %v481
    %598 = vmatpush.bf16.msra.mxu0 %v477
    %599 = vmatpush.bf16.msra.mxu0 %v473
    %600 = vmatpush.bf16.msra.mxu0 %v469
    %601 = vmatpush.bf16.msra.mxu0 %v465
    %602 = vmatpush.bf16.msra.mxu0 %v461
    %603 = vmatmul.bf16.gmra.mxu0 %v161
    %v604 = vpop.f32.mrf.mxu0
    %v605 = vadd.f32 %v592, %v604
    %v606 = vpop.f32.mrf.mxu0
    %607 = vdwg.mxu0
    %608 = vmatpush.bf16.msra.mxu0 %v458
    %609 = vmatpush.bf16.msra.mxu0 %v454
    %610 = vmatpush.bf16.msra.mxu0 %v450
    %611 = vmatpush.bf16.msra.mxu0 %v446
    %612 = vmatpush.bf16.msra.mxu0 %v442
    %613 = vmatpush.bf16.msra.mxu0 %v438
    %614 = vmatpush.bf16.msra.mxu0 %v434
    %615 = vmatpush.bf16.msra.mxu0 %v430
    %616 = vmatmul.bf16.gmra.mxu0 %v160
    %v617 = vpop.f32.mrf.mxu0
    %v618 = vadd.f32 %v230, %v617
    %v619 = vpop.f32.mrf.mxu0
    %620 = vdwg.mxu0
    %621 = vmatpush.bf16.msra.mxu0 %v490
    %622 = vmatpush.bf16.msra.mxu0 %v486
    %623 = vmatpush.bf16.msra.mxu0 %v482
    %624 = vmatpush.bf16.msra.mxu0 %v478
    %625 = vmatpush.bf16.msra.mxu0 %v474
    %626 = vmatpush.bf16.msra.mxu0 %v470
    %627 = vmatpush.bf16.msra.mxu0 %v466
    %628 = vmatpush.bf16.msra.mxu0 %v462
    %629 = vmatmul.bf16.gmra.mxu0 %v161
    %v630 = vpop.f32.mrf.mxu0
    %v631 = vadd.f32 %v618, %v630
    %v632 = vpop.f32.mrf.mxu0
    %633 = vdwg.mxu0
    %634 = vmatpush.bf16.msra.mxu0 %v459
    %635 = vmatpush.bf16.msra.mxu0 %v455
    %636 = vmatpush.bf16.msra.mxu0 %v451
    %637 = vmatpush.bf16.msra.mxu0 %v447
    %638 = vmatpush.bf16.msra.mxu0 %v443
    %639 = vmatpush.bf16.msra.mxu0 %v439
    %640 = vmatpush.bf16.msra.mxu0 %v435
    %641 = vmatpush.bf16.msra.mxu0 %v431
    %642 = vmatmul.bf16.gmra.mxu0 %v160
    %v643 = vpop.f32.mrf.mxu0
    %v644 = vadd.f32 %v231, %v643
    %v645 = vpop.f32.mrf.mxu0
    %646 = vdwg.mxu0
    %647 = vmatpush.bf16.msra.mxu0 %v491
    %648 = vmatpush.bf16.msra.mxu0 %v487
    %649 = vmatpush.bf16.msra.mxu0 %v483
    %650 = vmatpush.bf16.msra.mxu0 %v479
    %651 = vmatpush.bf16.msra.mxu0 %v475
    %652 = vmatpush.bf16.msra.mxu0 %v471
    %653 = vmatpush.bf16.msra.mxu0 %v467
    %654 = vmatpush.bf16.msra.mxu0 %v463
    %655 = vmatmul.bf16.gmra.mxu0 %v161
    %v656 = vpop.f32.mrf.mxu0
    %v657 = vadd.f32 %v644, %v656
    %v658 = vpop.f32.mrf.mxu0
    %659 = vdwg.mxu0
    %v660 = vsub.f32 0.0, %v579
    %v661 = vsub.f32 0.0, %v605
    %v662 = vsub.f32 0.0, %v631
    %v663 = vsub.f32 0.0, %v657
    %v664 = vmul.f32 %v660, 1.442695
    %v665 = vpow.pop %v664
    %v666 = vmul.f32 %v661, 1.442695
    %v667 = vpow.pop %v666
    %v668 = vmul.f32 %v662, 1.442695
    %v669 = vpow.pop %v668
    %v670 = vmul.f32 %v663, 1.442695
    %v671 = vpow.pop %v670
    %v672 = vadd.f32 %v665, 1.0
    %v673 = vadd.f32 %v667, 1.0
    %v674 = vadd.f32 %v669, 1.0
    %v675 = vadd.f32 %v671, 1.0
    %v676 = vrcp.pop %v672
    %v677 = vmul.f32 %v672, %v676
    %v678 = vsub.f32 1.0, %v677
    %v679 = vmul.f32 %v676, %v678
    %v680 = vadd.f32 %v676, %v679
    %vm681 = vweird.f32 %v672
    %vm682 = vweird.f32 %v676
    %vm683 = vmor %vm681, %vm682
    %v684 = vsel %vm683, %v676, %v680
    %v685 = vand.u32 2147483647, %v672
    %vm686 = vcmp.eq.f32.partialorder %v685, 8.507059e+37
    %v687 = vand.u32 %v672, 2147483648
    %v688 = vor.u32 1.1754944e-38, %v687
    %v689 = vsel %vm686, %v688, %v684
    %v690 = vmul.f32 1.0, %v689
    %v691 = vrcp.pop %v673
    %v692 = vmul.f32 %v673, %v691
    %v693 = vsub.f32 1.0, %v692
    %v694 = vmul.f32 %v691, %v693
    %v695 = vadd.f32 %v691, %v694
    %vm696 = vweird.f32 %v673
    %vm697 = vweird.f32 %v691
    %vm698 = vmor %vm696, %vm697
    %v699 = vsel %vm698, %v691, %v695
    %v700 = vand.u32 2147483647, %v673
    %vm701 = vcmp.eq.f32.partialorder %v700, 8.507059e+37
    %v702 = vand.u32 %v673, 2147483648
    %v703 = vor.u32 1.1754944e-38, %v702
    %v704 = vsel %vm701, %v703, %v699
    %v705 = vmul.f32 1.0, %v704
    %v706 = vrcp.pop %v674
    %v707 = vmul.f32 %v674, %v706
    %v708 = vsub.f32 1.0, %v707
    %v709 = vmul.f32 %v706, %v708
    %v710 = vadd.f32 %v706, %v709
    %vm711 = vweird.f32 %v674
    %vm712 = vweird.f32 %v706
    %vm713 = vmor %vm711, %vm712
    %v714 = vsel %vm713, %v706, %v710
    %v715 = vand.u32 2147483647, %v674
    %vm716 = vcmp.eq.f32.partialorder %v715, 8.507059e+37
    %v717 = vand.u32 %v674, 2147483648
    %v718 = vor.u32 1.1754944e-38, %v717
    %v719 = vsel %vm716, %v718, %v714
    %v720 = vmul.f32 1.0, %v719
    %v721 = vrcp.pop %v675
    %v722 = vmul.f32 %v675, %v721
    %v723 = vsub.f32 1.0, %v722
    %v724 = vmul.f32 %v721, %v723
    %v725 = vadd.f32 %v721, %v724
    %vm726 = vweird.f32 %v675
    %vm727 = vweird.f32 %v721
    %vm728 = vmor %vm726, %vm727
    %v729 = vsel %vm728, %v721, %v725
    %v730 = vand.u32 2147483647, %v675
    %vm731 = vcmp.eq.f32.partialorder %v730, 8.507059e+37
    %v732 = vand.u32 %v675, 2147483648
    %v733 = vor.u32 1.1754944e-38, %v732
    %v734 = vsel %vm731, %v733, %v729
    %v735 = vmul.f32 1.0, %v734
    %v736 = vmul.f32 %v579, %v690
    %v737 = vmul.f32 %v605, %v705
    %v738 = vmul.f32 %v631, %v720
    %v739 = vmul.f32 %v657, %v735
    %v740 = vpack.c.bf16 %v736, %v736
    %v741 = vpack.c.bf16 %v737, %v737
    %v742 = vpack.c.bf16 %v738, %v738
    %v743 = vpack.c.bf16 %v739, %v739
    %v744 = vld [vmem:[#allocation10] sm:$0xff]
    %v745 = vld [vmem:[#allocation10 + $0x8] sm:$0xff]
    %v746 = vld [vmem:[#allocation10 + $0x10] sm:$0xff]
    %v747 = vld [vmem:[#allocation10 + $0x18] sm:$0xff]
    %v748 = vld [vmem:[#allocation10 + $0x20] sm:$0xff]
    %v749 = vld [vmem:[#allocation10 + $0x28] sm:$0xff]
    %v750 = vld [vmem:[#allocation10 + $0x30] sm:$0xff]
    %v751 = vld [vmem:[#allocation10 + $0x38] sm:$0xff]
    %v752 = vld [vmem:[#allocation10 + $0x40] sm:$0xff]
    %v753 = vld [vmem:[#allocation10 + $0x48] sm:$0xff]
    %v754 = vld [vmem:[#allocation10 + $0x50] sm:$0xff]
    %v755 = vld [vmem:[#allocation10 + $0x58] sm:$0xff]
    %v756 = vld [vmem:[#allocation10 + $0x60] sm:$0xff]
    %v757 = vld [vmem:[#allocation10 + $0x68] sm:$0xff]
    %v758 = vld [vmem:[#allocation10 + $0x70] sm:$0xff]
    %v759 = vld [vmem:[#allocation10 + $0x78] sm:$0xff]
    %v760 = vld [vmem:[#allocation10 + $0x80] sm:$0xff]
    %v761 = vld [vmem:[#allocation10 + $0x88] sm:$0xff]
    %v762 = vld [vmem:[#allocation10 + $0x90] sm:$0xff]
    %v763 = vld [vmem:[#allocation10 + $0x98] sm:$0xff]
    %v764 = vld [vmem:[#allocation10 + $0xa0] sm:$0xff]
    %v765 = vld [vmem:[#allocation10 + $0xa8] sm:$0xff]
    %v766 = vld [vmem:[#allocation10 + $0xb0] sm:$0xff]
    %v767 = vld [vmem:[#allocation10 + $0xb8] sm:$0xff]
    %v768 = vld [vmem:[#allocation10 + $0xc0] sm:$0xff]
    %v769 = vld [vmem:[#allocation10 + $0xc8] sm:$0xff]
    %v770 = vld [vmem:[#allocation10 + $0xd0] sm:$0xff]
    %v771 = vld [vmem:[#allocation10 + $0xd8] sm:$0xff]
    %v772 = vld [vmem:[#allocation10 + $0xe0] sm:$0xff]
    %v773 = vld [vmem:[#allocation10 + $0xe8] sm:$0xff]
    %v774 = vld [vmem:[#allocation10 + $0xf0] sm:$0xff]
    %v775 = vld [vmem:[#allocation10 + $0xf8] sm:$0xff]
    %v776 = vld [vmem:[#allocation10 + $0x100] sm:$0xff]
    %v777 = vld [vmem:[#allocation10 + $0x108] sm:$0xff]
    %v778 = vld [vmem:[#allocation10 + $0x110] sm:$0xff]
    %v779 = vld [vmem:[#allocation10 + $0x118] sm:$0xff]
    %v780 = vld [vmem:[#allocation10 + $0x120] sm:$0xff]
    %v781 = vld [vmem:[#allocation10 + $0x128] sm:$0xff]
    %v782 = vld [vmem:[#allocation10 + $0x130] sm:$0xff]
    %v783 = vld [vmem:[#allocation10 + $0x138] sm:$0xff]
    %v784 = vld [vmem:[#allocation10 + $0x140] sm:$0xff]
    %v785 = vld [vmem:[#allocation10 + $0x148] sm:$0xff]
    %v786 = vld [vmem:[#allocation10 + $0x150] sm:$0xff]
    %v787 = vld [vmem:[#allocation10 + $0x158] sm:$0xff]
    %v788 = vld [vmem:[#allocation10 + $0x160] sm:$0xff]
    %v789 = vld [vmem:[#allocation10 + $0x168] sm:$0xff]
    %v790 = vld [vmem:[#allocation10 + $0x170] sm:$0xff]
    %v791 = vld [vmem:[#allocation10 + $0x178] sm:$0xff]
    %v792 = vld [vmem:[#allocation10 + $0x180] sm:$0xff]
    %v793 = vld [vmem:[#allocation10 + $0x188] sm:$0xff]
    %v794 = vld [vmem:[#allocation10 + $0x190] sm:$0xff]
    %v795 = vld [vmem:[#allocation10 + $0x198] sm:$0xff]
    %v796 = vld [vmem:[#allocation10 + $0x1a0] sm:$0xff]
    %v797 = vld [vmem:[#allocation10 + $0x1a8] sm:$0xff]
    %v798 = vld [vmem:[#allocation10 + $0x1b0] sm:$0xff]
    %v799 = vld [vmem:[#allocation10 + $0x1b8] sm:$0xff]
    %v800 = vld [vmem:[#allocation10 + $0x1c0] sm:$0xff]
    %v801 = vld [vmem:[#allocation10 + $0x1c8] sm:$0xff]
    %v802 = vld [vmem:[#allocation10 + $0x1d0] sm:$0xff]
    %v803 = vld [vmem:[#allocation10 + $0x1d8] sm:$0xff]
    %v804 = vld [vmem:[#allocation10 + $0x1e0] sm:$0xff]
    %v805 = vld [vmem:[#allocation10 + $0x1e8] sm:$0xff]
    %v806 = vld [vmem:[#allocation10 + $0x1f0] sm:$0xff]
    %v807 = vld [vmem:[#allocation10 + $0x1f8] sm:$0xff]
    %v808 = vld [vmem:[#allocation10 + $0x200] sm:$0xff]
    %v809 = vld [vmem:[#allocation10 + $0x208] sm:$0xff]
    %v810 = vld [vmem:[#allocation10 + $0x210] sm:$0xff]
    %v811 = vld [vmem:[#allocation10 + $0x218] sm:$0xff]
    %v812 = vld [vmem:[#allocation10 + $0x220] sm:$0xff]
    %v813 = vld [vmem:[#allocation10 + $0x228] sm:$0xff]
    %v814 = vld [vmem:[#allocation10 + $0x230] sm:$0xff]
    %v815 = vld [vmem:[#allocation10 + $0x238] sm:$0xff]
    %v816 = vld [vmem:[#allocation10 + $0x240] sm:$0xff]
    %v817 = vld [vmem:[#allocation10 + $0x248] sm:$0xff]
    %v818 = vld [vmem:[#allocation10 + $0x250] sm:$0xff]
    %v819 = vld [vmem:[#allocation10 + $0x258] sm:$0xff]
    %v820 = vld [vmem:[#allocation10 + $0x260] sm:$0xff]
    %v821 = vld [vmem:[#allocation10 + $0x268] sm:$0xff]
    %v822 = vld [vmem:[#allocation10 + $0x270] sm:$0xff]
    %v823 = vld [vmem:[#allocation10 + $0x278] sm:$0xff]
    %v824 = vld [vmem:[#allocation10 + $0x280] sm:$0xff]
    %v825 = vld [vmem:[#allocation10 + $0x288] sm:$0xff]
    %v826 = vld [vmem:[#allocation10 + $0x290] sm:$0xff]
    %v827 = vld [vmem:[#allocation10 + $0x298] sm:$0xff]
    %v828 = vld [vmem:[#allocation10 + $0x2a0] sm:$0xff]
    %v829 = vld [vmem:[#allocation10 + $0x2a8] sm:$0xff]
    %v830 = vld [vmem:[#allocation10 + $0x2b0] sm:$0xff]
    %v831 = vld [vmem:[#allocation10 + $0x2b8] sm:$0xff]
    %v832 = vld [vmem:[#allocation10 + $0x2c0] sm:$0xff]
    %v833 = vld [vmem:[#allocation10 + $0x2c8] sm:$0xff]
    %v834 = vld [vmem:[#allocation10 + $0x2d0] sm:$0xff]
    %v835 = vld [vmem:[#allocation10 + $0x2d8] sm:$0xff]
    %v836 = vld [vmem:[#allocation10 + $0x2e0] sm:$0xff]
    %v837 = vld [vmem:[#allocation10 + $0x2e8] sm:$0xff]
    %v838 = vld [vmem:[#allocation10 + $0x2f0] sm:$0xff]
    %v839 = vld [vmem:[#allocation10 + $0x2f8] sm:$0xff]
    %v840 = vld [vmem:[#allocation10 + $0x300] sm:$0xff]
    %v841 = vld [vmem:[#allocation10 + $0x308] sm:$0xff]
    %v842 = vld [vmem:[#allocation10 + $0x310] sm:$0xff]
    %v843 = vld [vmem:[#allocation10 + $0x318] sm:$0xff]
    %v844 = vld [vmem:[#allocation10 + $0x320] sm:$0xff]
    %v845 = vld [vmem:[#allocation10 + $0x328] sm:$0xff]
    %v846 = vld [vmem:[#allocation10 + $0x330] sm:$0xff]
    %v847 = vld [vmem:[#allocation10 + $0x338] sm:$0xff]
    %v848 = vld [vmem:[#allocation10 + $0x340] sm:$0xff]
    %v849 = vld [vmem:[#allocation10 + $0x348] sm:$0xff]
    %v850 = vld [vmem:[#allocation10 + $0x350] sm:$0xff]
    %v851 = vld [vmem:[#allocation10 + $0x358] sm:$0xff]
    %v852 = vld [vmem:[#allocation10 + $0x360] sm:$0xff]
    %v853 = vld [vmem:[#allocation10 + $0x368] sm:$0xff]
    %v854 = vld [vmem:[#allocation10 + $0x370] sm:$0xff]
    %v855 = vld [vmem:[#allocation10 + $0x378] sm:$0xff]
    %v856 = vld [vmem:[#allocation10 + $0x380] sm:$0xff]
    %v857 = vld [vmem:[#allocation10 + $0x388] sm:$0xff]
    %v858 = vld [vmem:[#allocation10 + $0x390] sm:$0xff]
    %v859 = vld [vmem:[#allocation10 + $0x398] sm:$0xff]
    %v860 = vld [vmem:[#allocation10 + $0x3a0] sm:$0xff]
    %v861 = vld [vmem:[#allocation10 + $0x3a8] sm:$0xff]
    %v862 = vld [vmem:[#allocation10 + $0x3b0] sm:$0xff]
    %v863 = vld [vmem:[#allocation10 + $0x3b8] sm:$0xff]
    %v864 = vld [vmem:[#allocation10 + $0x3c0] sm:$0xff]
    %v865 = vld [vmem:[#allocation10 + $0x3c8] sm:$0xff]
    %v866 = vld [vmem:[#allocation10 + $0x3d0] sm:$0xff]
    %v867 = vld [vmem:[#allocation10 + $0x3d8] sm:$0xff]
    %v868 = vld [vmem:[#allocation10 + $0x3e0] sm:$0xff]
    %v869 = vld [vmem:[#allocation10 + $0x3e8] sm:$0xff]
    %v870 = vld [vmem:[#allocation10 + $0x3f0] sm:$0xff]
    %v871 = vld [vmem:[#allocation10 + $0x3f8] sm:$0xff]
    %v872 = vld [vmem:[%s5] sm:$0xf]
    %v874 = vperm.slane %v872, 0
    %v875 = vperm.slane %v872, 1
    %v876 = vperm.slane %v872, 2
    %v877 = vperm.slane %v872, 3
    %v1010 = vunpack.c.l.b16 %v744
    %v1011 = vunpack.c.h.b16 %v744
    %v1012 = vunpack.c.l.b16 %v745
    %v1013 = vunpack.c.h.b16 %v745
    %v1014 = vunpack.c.l.b16 %v746
    %v1015 = vunpack.c.h.b16 %v746
    %v1016 = vunpack.c.l.b16 %v747
    %v1017 = vunpack.c.h.b16 %v747
    %v1018 = vunpack.c.l.b16 %v748
    %v1019 = vunpack.c.h.b16 %v748
    %v1020 = vunpack.c.l.b16 %v749
    %v1021 = vunpack.c.h.b16 %v749
    %v1022 = vunpack.c.l.b16 %v750
    %v1023 = vunpack.c.h.b16 %v750
    %v1024 = vunpack.c.l.b16 %v751
    %v1025 = vunpack.c.h.b16 %v751
    %v1026 = vunpack.c.l.b16 %v752
    %v1027 = vunpack.c.h.b16 %v752
    %v1028 = vunpack.c.l.b16 %v753
    %v1029 = vunpack.c.h.b16 %v753
    %v1030 = vunpack.c.l.b16 %v754
    %v1031 = vunpack.c.h.b16 %v754
    %v1032 = vunpack.c.l.b16 %v755
    %v1033 = vunpack.c.h.b16 %v755
    %v1034 = vunpack.c.l.b16 %v756
    %v1035 = vunpack.c.h.b16 %v756
    %v1036 = vunpack.c.l.b16 %v757
    %v1037 = vunpack.c.h.b16 %v757
    %v1038 = vunpack.c.l.b16 %v758
    %v1039 = vunpack.c.h.b16 %v758
    %v1040 = vunpack.c.l.b16 %v759
    %v1041 = vunpack.c.h.b16 %v759
    %v1042 = vunpack.c.l.b16 %v760
    %v1043 = vunpack.c.h.b16 %v760
    %v1044 = vunpack.c.l.b16 %v761
    %v1045 = vunpack.c.h.b16 %v761
    %v1046 = vunpack.c.l.b16 %v762
    %v1047 = vunpack.c.h.b16 %v762
    %v1048 = vunpack.c.l.b16 %v763
    %v1049 = vunpack.c.h.b16 %v763
    %v1050 = vunpack.c.l.b16 %v764
    %v1051 = vunpack.c.h.b16 %v764
    %v1052 = vunpack.c.l.b16 %v765
    %v1053 = vunpack.c.h.b16 %v765
    %v1054 = vunpack.c.l.b16 %v766
    %v1055 = vunpack.c.h.b16 %v766
    %v1056 = vunpack.c.l.b16 %v767
    %v1057 = vunpack.c.h.b16 %v767
    %v1058 = vunpack.c.l.b16 %v768
    %v1059 = vunpack.c.h.b16 %v768
    %v1060 = vunpack.c.l.b16 %v769
    %v1061 = vunpack.c.h.b16 %v769
    %v1062 = vunpack.c.l.b16 %v770
    %v1063 = vunpack.c.h.b16 %v770
    %v1064 = vunpack.c.l.b16 %v771
    %v1065 = vunpack.c.h.b16 %v771
    %v1066 = vunpack.c.l.b16 %v772
    %v1067 = vunpack.c.h.b16 %v772
    %v1068 = vunpack.c.l.b16 %v773
    %v1069 = vunpack.c.h.b16 %v773
    %v1070 = vunpack.c.l.b16 %v774
    %v1071 = vunpack.c.h.b16 %v774
    %v1072 = vunpack.c.l.b16 %v775
    %v1073 = vunpack.c.h.b16 %v775
    %v1074 = vunpack.c.l.b16 %v776
    %v1075 = vunpack.c.h.b16 %v776
    %v1076 = vunpack.c.l.b16 %v777
    %v1077 = vunpack.c.h.b16 %v777
    %v1078 = vunpack.c.l.b16 %v778
    %v1079 = vunpack.c.h.b16 %v778
    %v1080 = vunpack.c.l.b16 %v779
    %v1081 = vunpack.c.h.b16 %v779
    %v1082 = vunpack.c.l.b16 %v780
    %v1083 = vunpack.c.h.b16 %v780
    %v1084 = vunpack.c.l.b16 %v781
    %v1085 = vunpack.c.h.b16 %v781
    %v1086 = vunpack.c.l.b16 %v782
    %v1087 = vunpack.c.h.b16 %v782
    %v1088 = vunpack.c.l.b16 %v783
    %v1089 = vunpack.c.h.b16 %v783
    %v1090 = vunpack.c.l.b16 %v784
    %v1091 = vunpack.c.h.b16 %v784
    %v1092 = vunpack.c.l.b16 %v785
    %v1093 = vunpack.c.h.b16 %v785
    %v1094 = vunpack.c.l.b16 %v786
    %v1095 = vunpack.c.h.b16 %v786
    %v1096 = vunpack.c.l.b16 %v787
    %v1097 = vunpack.c.h.b16 %v787
    %v1098 = vunpack.c.l.b16 %v788
    %v1099 = vunpack.c.h.b16 %v788
    %v1100 = vunpack.c.l.b16 %v789
    %v1101 = vunpack.c.h.b16 %v789
    %v1102 = vunpack.c.l.b16 %v790
    %v1103 = vunpack.c.h.b16 %v790
    %v1104 = vunpack.c.l.b16 %v791
    %v1105 = vunpack.c.h.b16 %v791
    %v1106 = vunpack.c.l.b16 %v792
    %v1107 = vunpack.c.h.b16 %v792
    %v1108 = vunpack.c.l.b16 %v793
    %v1109 = vunpack.c.h.b16 %v793
    %v1110 = vunpack.c.l.b16 %v794
    %v1111 = vunpack.c.h.b16 %v794
    %v1112 = vunpack.c.l.b16 %v795
    %v1113 = vunpack.c.h.b16 %v795
    %v1114 = vunpack.c.l.b16 %v796
    %v1115 = vunpack.c.h.b16 %v796
    %v1116 = vunpack.c.l.b16 %v797
    %v1117 = vunpack.c.h.b16 %v797
    %v1118 = vunpack.c.l.b16 %v798
    %v1119 = vunpack.c.h.b16 %v798
    %v1120 = vunpack.c.l.b16 %v799
    %v1121 = vunpack.c.h.b16 %v799
    %v1122 = vunpack.c.l.b16 %v800
    %v1123 = vunpack.c.h.b16 %v800
    %v1124 = vunpack.c.l.b16 %v801
    %v1125 = vunpack.c.h.b16 %v801
    %v1126 = vunpack.c.l.b16 %v802
    %v1127 = vunpack.c.h.b16 %v802
    %v1128 = vunpack.c.l.b16 %v803
    %v1129 = vunpack.c.h.b16 %v803
    %v1130 = vunpack.c.l.b16 %v804
    %v1131 = vunpack.c.h.b16 %v804
    %v1132 = vunpack.c.l.b16 %v805
    %v1133 = vunpack.c.h.b16 %v805
    %v1134 = vunpack.c.l.b16 %v806
    %v1135 = vunpack.c.h.b16 %v806
    %v1136 = vunpack.c.l.b16 %v807
    %v1137 = vunpack.c.h.b16 %v807
    %v1138 = vunpack.c.l.b16 %v808
    %v1139 = vunpack.c.h.b16 %v808
    %v1140 = vunpack.c.l.b16 %v809
    %v1141 = vunpack.c.h.b16 %v809
    %v1142 = vunpack.c.l.b16 %v810
    %v1143 = vunpack.c.h.b16 %v810
    %v1144 = vunpack.c.l.b16 %v811
    %v1145 = vunpack.c.h.b16 %v811
    %v1146 = vunpack.c.l.b16 %v812
    %v1147 = vunpack.c.h.b16 %v812
    %v1148 = vunpack.c.l.b16 %v813
    %v1149 = vunpack.c.h.b16 %v813
    %v1150 = vunpack.c.l.b16 %v814
    %v1151 = vunpack.c.h.b16 %v814
    %v1152 = vunpack.c.l.b16 %v815
    %v1153 = vunpack.c.h.b16 %v815
    %v1154 = vunpack.c.l.b16 %v816
    %v1155 = vunpack.c.h.b16 %v816
    %v1156 = vunpack.c.l.b16 %v817
    %v1157 = vunpack.c.h.b16 %v817
    %v1158 = vunpack.c.l.b16 %v818
    %v1159 = vunpack.c.h.b16 %v818
    %v1160 = vunpack.c.l.b16 %v819
    %v1161 = vunpack.c.h.b16 %v819
    %v1162 = vunpack.c.l.b16 %v820
    %v1163 = vunpack.c.h.b16 %v820
    %v1164 = vunpack.c.l.b16 %v821
    %v1165 = vunpack.c.h.b16 %v821
    %v1166 = vunpack.c.l.b16 %v822
    %v1167 = vunpack.c.h.b16 %v822
    %v1168 = vunpack.c.l.b16 %v823
    %v1169 = vunpack.c.h.b16 %v823
    %v1170 = vunpack.c.l.b16 %v824
    %v1171 = vunpack.c.h.b16 %v824
    %v1172 = vunpack.c.l.b16 %v825
    %v1173 = vunpack.c.h.b16 %v825
    %v1174 = vunpack.c.l.b16 %v826
    %v1175 = vunpack.c.h.b16 %v826
    %v1176 = vunpack.c.l.b16 %v827
    %v1177 = vunpack.c.h.b16 %v827
    %v1178 = vunpack.c.l.b16 %v828
    %v1179 = vunpack.c.h.b16 %v828
    %v1180 = vunpack.c.l.b16 %v829
    %v1181 = vunpack.c.h.b16 %v829
    %v1182 = vunpack.c.l.b16 %v830
    %v1183 = vunpack.c.h.b16 %v830
    %v1184 = vunpack.c.l.b16 %v831
    %v1185 = vunpack.c.h.b16 %v831
    %v1186 = vunpack.c.l.b16 %v832
    %v1187 = vunpack.c.h.b16 %v832
    %v1188 = vunpack.c.l.b16 %v833
    %v1189 = vunpack.c.h.b16 %v833
    %v1190 = vunpack.c.l.b16 %v834
    %v1191 = vunpack.c.h.b16 %v834
    %v1192 = vunpack.c.l.b16 %v835
    %v1193 = vunpack.c.h.b16 %v835
    %v1194 = vunpack.c.l.b16 %v836
    %v1195 = vunpack.c.h.b16 %v836
    %v1196 = vunpack.c.l.b16 %v837
    %v1197 = vunpack.c.h.b16 %v837
    %v1198 = vunpack.c.l.b16 %v838
    %v1199 = vunpack.c.h.b16 %v838
    %v1200 = vunpack.c.l.b16 %v839
    %v1201 = vunpack.c.h.b16 %v839
    %v1202 = vunpack.c.l.b16 %v840
    %v1203 = vunpack.c.h.b16 %v840
    %v1204 = vunpack.c.l.b16 %v841
    %v1205 = vunpack.c.h.b16 %v841
    %v1206 = vunpack.c.l.b16 %v842
    %v1207 = vunpack.c.h.b16 %v842
    %v1208 = vunpack.c.l.b16 %v843
    %v1209 = vunpack.c.h.b16 %v843
    %v1210 = vunpack.c.l.b16 %v844
    %v1211 = vunpack.c.h.b16 %v844
    %v1212 = vunpack.c.l.b16 %v845
    %v1213 = vunpack.c.h.b16 %v845
    %v1214 = vunpack.c.l.b16 %v846
    %v1215 = vunpack.c.h.b16 %v846
    %v1216 = vunpack.c.l.b16 %v847
    %v1217 = vunpack.c.h.b16 %v847
    %v1218 = vunpack.c.l.b16 %v848
    %v1219 = vunpack.c.h.b16 %v848
    %v1220 = vunpack.c.l.b16 %v849
    %v1221 = vunpack.c.h.b16 %v849
    %v1222 = vunpack.c.l.b16 %v850
    %v1223 = vunpack.c.h.b16 %v850
    %v1224 = vunpack.c.l.b16 %v851
    %v1225 = vunpack.c.h.b16 %v851
    %v1226 = vunpack.c.l.b16 %v852
    %v1227 = vunpack.c.h.b16 %v852
    %v1228 = vunpack.c.l.b16 %v853
    %v1229 = vunpack.c.h.b16 %v853
    %v1230 = vunpack.c.l.b16 %v854
    %v1231 = vunpack.c.h.b16 %v854
    %v1232 = vunpack.c.l.b16 %v855
    %v1233 = vunpack.c.h.b16 %v855
    %v1234 = vunpack.c.l.b16 %v856
    %v1235 = vunpack.c.h.b16 %v856
    %v1236 = vunpack.c.l.b16 %v857
    %v1237 = vunpack.c.h.b16 %v857
    %v1238 = vunpack.c.l.b16 %v858
    %v1239 = vunpack.c.h.b16 %v858
    %v1240 = vunpack.c.l.b16 %v859
    %v1241 = vunpack.c.h.b16 %v859
    %v1242 = vunpack.c.l.b16 %v860
    %v1243 = vunpack.c.h.b16 %v860
    %v1244 = vunpack.c.l.b16 %v861
    %v1245 = vunpack.c.h.b16 %v861
    %v1246 = vunpack.c.l.b16 %v862
    %v1247 = vunpack.c.h.b16 %v862
    %v1248 = vunpack.c.l.b16 %v863
    %v1249 = vunpack.c.h.b16 %v863
    %v1250 = vunpack.c.l.b16 %v864
    %v1251 = vunpack.c.h.b16 %v864
    %v1252 = vunpack.c.l.b16 %v865
    %v1253 = vunpack.c.h.b16 %v865
    %v1254 = vunpack.c.l.b16 %v866
    %v1255 = vunpack.c.h.b16 %v866
    %v1256 = vunpack.c.l.b16 %v867
    %v1257 = vunpack.c.h.b16 %v867
    %v1258 = vunpack.c.l.b16 %v868
    %v1259 = vunpack.c.h.b16 %v868
    %v1260 = vunpack.c.l.b16 %v869
    %v1261 = vunpack.c.h.b16 %v869
    %v1262 = vunpack.c.l.b16 %v870
    %v1263 = vunpack.c.h.b16 %v870
    %v1264 = vunpack.c.l.b16 %v871
    %v1265 = vunpack.c.h.b16 %v871
    %v1266 = vpack.c.b16 %v1014, %v1010
    %v1267 = vpack.c.b16 %v1015, %v1011
    %v1268 = vpack.c.b16 %v1016, %v1012
    %v1269 = vpack.c.b16 %v1017, %v1013
    %v1270 = vpack.c.b16 %v1022, %v1018
    %v1271 = vpack.c.b16 %v1023, %v1019
    %v1272 = vpack.c.b16 %v1024, %v1020
    %v1273 = vpack.c.b16 %v1025, %v1021
    %v1274 = vpack.c.b16 %v1030, %v1026
    %v1275 = vpack.c.b16 %v1031, %v1027
    %v1276 = vpack.c.b16 %v1032, %v1028
    %v1277 = vpack.c.b16 %v1033, %v1029
    %v1278 = vpack.c.b16 %v1038, %v1034
    %v1279 = vpack.c.b16 %v1039, %v1035
    %v1280 = vpack.c.b16 %v1040, %v1036
    %v1281 = vpack.c.b16 %v1041, %v1037
    %v1282 = vpack.c.b16 %v1046, %v1042
    %v1283 = vpack.c.b16 %v1047, %v1043
    %v1284 = vpack.c.b16 %v1048, %v1044
    %v1285 = vpack.c.b16 %v1049, %v1045
    %v1286 = vpack.c.b16 %v1054, %v1050
    %v1287 = vpack.c.b16 %v1055, %v1051
    %v1288 = vpack.c.b16 %v1056, %v1052
    %v1289 = vpack.c.b16 %v1057, %v1053
    %v1290 = vpack.c.b16 %v1062, %v1058
    %v1291 = vpack.c.b16 %v1063, %v1059
    %v1292 = vpack.c.b16 %v1064, %v1060
    %v1293 = vpack.c.b16 %v1065, %v1061
    %v1294 = vpack.c.b16 %v1070, %v1066
    %v1295 = vpack.c.b16 %v1071, %v1067
    %v1296 = vpack.c.b16 %v1072, %v1068
    %v1297 = vpack.c.b16 %v1073, %v1069
    %v1298 = vpack.c.b16 %v1078, %v1074
    %v1299 = vpack.c.b16 %v1079, %v1075
    %v1300 = vpack.c.b16 %v1080, %v1076
    %v1301 = vpack.c.b16 %v1081, %v1077
    %v1302 = vpack.c.b16 %v1086, %v1082
    %v1303 = vpack.c.b16 %v1087, %v1083
    %v1304 = vpack.c.b16 %v1088, %v1084
    %v1305 = vpack.c.b16 %v1089, %v1085
    %v1306 = vpack.c.b16 %v1094, %v1090
    %v1307 = vpack.c.b16 %v1095, %v1091
    %v1308 = vpack.c.b16 %v1096, %v1092
    %v1309 = vpack.c.b16 %v1097, %v1093
    %v1310 = vpack.c.b16 %v1102, %v1098
    %v1311 = vpack.c.b16 %v1103, %v1099
    %v1312 = vpack.c.b16 %v1104, %v1100
    %v1313 = vpack.c.b16 %v1105, %v1101
    %v1314 = vpack.c.b16 %v1110, %v1106
    %v1315 = vpack.c.b16 %v1111, %v1107
    %v1316 = vpack.c.b16 %v1112, %v1108
    %v1317 = vpack.c.b16 %v1113, %v1109
    %v1318 = vpack.c.b16 %v1118, %v1114
    %v1319 = vpack.c.b16 %v1119, %v1115
    %v1320 = vpack.c.b16 %v1120, %v1116
    %v1321 = vpack.c.b16 %v1121, %v1117
    %v1322 = vpack.c.b16 %v1126, %v1122
    %v1323 = vpack.c.b16 %v1127, %v1123
    %v1324 = vpack.c.b16 %v1128, %v1124
    %v1325 = vpack.c.b16 %v1129, %v1125
    %v1326 = vpack.c.b16 %v1134, %v1130
    %v1327 = vpack.c.b16 %v1135, %v1131
    %v1328 = vpack.c.b16 %v1136, %v1132
    %v1329 = vpack.c.b16 %v1137, %v1133
    %v1330 = vpack.c.b16 %v1142, %v1138
    %v1331 = vpack.c.b16 %v1143, %v1139
    %v1332 = vpack.c.b16 %v1144, %v1140
    %v1333 = vpack.c.b16 %v1145, %v1141
    %v1334 = vpack.c.b16 %v1150, %v1146
    %v1335 = vpack.c.b16 %v1151, %v1147
    %v1336 = vpack.c.b16 %v1152, %v1148
    %v1337 = vpack.c.b16 %v1153, %v1149
    %v1338 = vpack.c.b16 %v1158, %v1154
    %v1339 = vpack.c.b16 %v1159, %v1155
    %v1340 = vpack.c.b16 %v1160, %v1156
    %v1341 = vpack.c.b16 %v1161, %v1157
    %v1342 = vpack.c.b16 %v1166, %v1162
    %v1343 = vpack.c.b16 %v1167, %v1163
    %v1344 = vpack.c.b16 %v1168, %v1164
    %v1345 = vpack.c.b16 %v1169, %v1165
    %v1346 = vpack.c.b16 %v1174, %v1170
    %v1347 = vpack.c.b16 %v1175, %v1171
    %v1348 = vpack.c.b16 %v1176, %v1172
    %v1349 = vpack.c.b16 %v1177, %v1173
    %v1350 = vpack.c.b16 %v1182, %v1178
    %v1351 = vpack.c.b16 %v1183, %v1179
    %v1352 = vpack.c.b16 %v1184, %v1180
    %v1353 = vpack.c.b16 %v1185, %v1181
    %v1354 = vpack.c.b16 %v1190, %v1186
    %v1355 = vpack.c.b16 %v1191, %v1187
    %v1356 = vpack.c.b16 %v1192, %v1188
    %v1357 = vpack.c.b16 %v1193, %v1189
    %v1358 = vpack.c.b16 %v1198, %v1194
    %v1359 = vpack.c.b16 %v1199, %v1195
    %v1360 = vpack.c.b16 %v1200, %v1196
    %v1361 = vpack.c.b16 %v1201, %v1197
    %v1362 = vpack.c.b16 %v1206, %v1202
    %v1363 = vpack.c.b16 %v1207, %v1203
    %v1364 = vpack.c.b16 %v1208, %v1204
    %v1365 = vpack.c.b16 %v1209, %v1205
    %v1366 = vpack.c.b16 %v1214, %v1210
    %v1367 = vpack.c.b16 %v1215, %v1211
    %v1368 = vpack.c.b16 %v1216, %v1212
    %v1369 = vpack.c.b16 %v1217, %v1213
    %v1370 = vpack.c.b16 %v1222, %v1218
    %v1371 = vpack.c.b16 %v1223, %v1219
    %v1372 = vpack.c.b16 %v1224, %v1220
    %v1373 = vpack.c.b16 %v1225, %v1221
    %v1374 = vpack.c.b16 %v1230, %v1226
    %v1375 = vpack.c.b16 %v1231, %v1227
    %v1376 = vpack.c.b16 %v1232, %v1228
    %v1377 = vpack.c.b16 %v1233, %v1229
    %v1378 = vpack.c.b16 %v1238, %v1234
    %v1379 = vpack.c.b16 %v1239, %v1235
    %v1380 = vpack.c.b16 %v1240, %v1236
    %v1381 = vpack.c.b16 %v1241, %v1237
    %v1382 = vpack.c.b16 %v1246, %v1242
    %v1383 = vpack.c.b16 %v1247, %v1243
    %v1384 = vpack.c.b16 %v1248, %v1244
    %v1385 = vpack.c.b16 %v1249, %v1245
    %v1386 = vpack.c.b16 %v1254, %v1250
    %v1387 = vpack.c.b16 %v1255, %v1251
    %v1388 = vpack.c.b16 %v1256, %v1252
    %v1389 = vpack.c.b16 %v1257, %v1253
    %v1390 = vpack.c.b16 %v1262, %v1258
    %v1391 = vpack.c.b16 %v1263, %v1259
    %v1392 = vpack.c.b16 %v1264, %v1260
    %v1393 = vpack.c.b16 %v1265, %v1261
    %1522 = vmatpush.bf16.msra.mxu0 %v1294
    %1523 = vmatpush.bf16.msra.mxu0 %v1290
    %1524 = vmatpush.bf16.msra.mxu0 %v1286
    %1525 = vmatpush.bf16.msra.mxu0 %v1282
    %1526 = vmatpush.bf16.msra.mxu0 %v1278
    %1527 = vmatpush.bf16.msra.mxu0 %v1274
    %1528 = vmatpush.bf16.msra.mxu0 %v1270
    %1529 = vmatpush.bf16.msra.mxu0 %v1266
    %1530 = vmatmul.bf16.gmra.mxu0 %v740
    %v1531 = vpop.f32.mrf.mxu0
    %v1532 = vadd.f32 %v874, %v1531
    %v1533 = vpop.f32.mrf.mxu0
    %1534 = vdwg.mxu0
    %1535 = vmatpush.bf16.msra.mxu0 %v1326
    %1536 = vmatpush.bf16.msra.mxu0 %v1322
    %1537 = vmatpush.bf16.msra.mxu0 %v1318
    %1538 = vmatpush.bf16.msra.mxu0 %v1314
    %1539 = vmatpush.bf16.msra.mxu0 %v1310
    %1540 = vmatpush.bf16.msra.mxu0 %v1306
    %1541 = vmatpush.bf16.msra.mxu0 %v1302
    %1542 = vmatpush.bf16.msra.mxu0 %v1298
    %1543 = vmatmul.bf16.gmra.mxu0 %v741
    %v1544 = vpop.f32.mrf.mxu0
    %v1545 = vadd.f32 %v1532, %v1544
    %v1546 = vpop.f32.mrf.mxu0
    %1547 = vdwg.mxu0
    %1548 = vmatpush.bf16.msra.mxu0 %v1358
    %1549 = vmatpush.bf16.msra.mxu0 %v1354
    %1550 = vmatpush.bf16.msra.mxu0 %v1350
    %1551 = vmatpush.bf16.msra.mxu0 %v1346
    %1552 = vmatpush.bf16.msra.mxu0 %v1342
    %1553 = vmatpush.bf16.msra.mxu0 %v1338
    %1554 = vmatpush.bf16.msra.mxu0 %v1334
    %1555 = vmatpush.bf16.msra.mxu0 %v1330
    %1556 = vmatmul.bf16.gmra.mxu0 %v742
    %v1557 = vpop.f32.mrf.mxu0
    %v1558 = vadd.f32 %v1545, %v1557
    %v1559 = vpop.f32.mrf.mxu0
    %1560 = vdwg.mxu0
    %1561 = vmatpush.bf16.msra.mxu0 %v1390
    %1562 = vmatpush.bf16.msra.mxu0 %v1386
    %1563 = vmatpush.bf16.msra.mxu0 %v1382
    %1564 = vmatpush.bf16.msra.mxu0 %v1378
    %1565 = vmatpush.bf16.msra.mxu0 %v1374
    %1566 = vmatpush.bf16.msra.mxu0 %v1370
    %1567 = vmatpush.bf16.msra.mxu0 %v1366
    %1568 = vmatpush.bf16.msra.mxu0 %v1362
    %1569 = vmatmul.bf16.gmra.mxu0 %v743
    %v1570 = vpop.f32.mrf.mxu0
    %v1571 = vadd.f32 %v1558, %v1570
    %v1572 = vpop.f32.mrf.mxu0
    %1573 = vdwg.mxu0
    %1574 = vmatpush.bf16.msra.mxu0 %v1295
    %1575 = vmatpush.bf16.msra.mxu0 %v1291
    %1576 = vmatpush.bf16.msra.mxu0 %v1287
    %1577 = vmatpush.bf16.msra.mxu0 %v1283
    %1578 = vmatpush.bf16.msra.mxu0 %v1279
    %1579 = vmatpush.bf16.msra.mxu0 %v1275
    %1580 = vmatpush.bf16.msra.mxu0 %v1271
    %1581 = vmatpush.bf16.msra.mxu0 %v1267
    %1582 = vmatmul.bf16.gmra.mxu0 %v740
    %v1583 = vpop.f32.mrf.mxu0
    %v1584 = vadd.f32 %v875, %v1583
    %v1585 = vpop.f32.mrf.mxu0
    %1586 = vdwg.mxu0
    %1587 = vmatpush.bf16.msra.mxu0 %v1327
    %1588 = vmatpush.bf16.msra.mxu0 %v1323
    %1589 = vmatpush.bf16.msra.mxu0 %v1319
    %1590 = vmatpush.bf16.msra.mxu0 %v1315
    %1591 = vmatpush.bf16.msra.mxu0 %v1311
    %1592 = vmatpush.bf16.msra.mxu0 %v1307
    %1593 = vmatpush.bf16.msra.mxu0 %v1303
    %1594 = vmatpush.bf16.msra.mxu0 %v1299
    %1595 = vmatmul.bf16.gmra.mxu0 %v741
    %v1596 = vpop.f32.mrf.mxu0
    %v1597 = vadd.f32 %v1584, %v1596
    %v1598 = vpop.f32.mrf.mxu0
    %1599 = vdwg.mxu0
    %1600 = vmatpush.bf16.msra.mxu0 %v1359
    %1601 = vmatpush.bf16.msra.mxu0 %v1355
    %1602 = vmatpush.bf16.msra.mxu0 %v1351
    %1603 = vmatpush.bf16.msra.mxu0 %v1347
    %1604 = vmatpush.bf16.msra.mxu0 %v1343
    %1605 = vmatpush.bf16.msra.mxu0 %v1339
    %1606 = vmatpush.bf16.msra.mxu0 %v1335
    %1607 = vmatpush.bf16.msra.mxu0 %v1331
    %1608 = vmatmul.bf16.gmra.mxu0 %v742
    %v1609 = vpop.f32.mrf.mxu0
    %v1610 = vadd.f32 %v1597, %v1609
    %v1611 = vpop.f32.mrf.mxu0
    %1612 = vdwg.mxu0
    %1613 = vmatpush.bf16.msra.mxu0 %v1391
    %1614 = vmatpush.bf16.msra.mxu0 %v1387
    %1615 = vmatpush.bf16.msra.mxu0 %v1383
    %1616 = vmatpush.bf16.msra.mxu0 %v1379
    %1617 = vmatpush.bf16.msra.mxu0 %v1375
    %1618 = vmatpush.bf16.msra.mxu0 %v1371
    %1619 = vmatpush.bf16.msra.mxu0 %v1367
    %1620 = vmatpush.bf16.msra.mxu0 %v1363
    %1621 = vmatmul.bf16.gmra.mxu0 %v743
    %v1622 = vpop.f32.mrf.mxu0
    %v1623 = vadd.f32 %v1610, %v1622
    %v1624 = vpop.f32.mrf.mxu0
    %1625 = vdwg.mxu0
    %1626 = vmatpush.bf16.msra.mxu0 %v1296
    %1627 = vmatpush.bf16.msra.mxu0 %v1292
    %1628 = vmatpush.bf16.msra.mxu0 %v1288
    %1629 = vmatpush.bf16.msra.mxu0 %v1284
    %1630 = vmatpush.bf16.msra.mxu0 %v1280
    %1631 = vmatpush.bf16.msra.mxu0 %v1276
    %1632 = vmatpush.bf16.msra.mxu0 %v1272
    %1633 = vmatpush.bf16.msra.mxu0 %v1268
    %1634 = vmatmul.bf16.gmra.mxu0 %v740
    %v1635 = vpop.f32.mrf.mxu0
    %v1636 = vadd.f32 %v876, %v1635
    %v1637 = vpop.f32.mrf.mxu0
    %1638 = vdwg.mxu0
    %1639 = vmatpush.bf16.msra.mxu0 %v1328
    %1640 = vmatpush.bf16.msra.mxu0 %v1324
    %1641 = vmatpush.bf16.msra.mxu0 %v1320
    %1642 = vmatpush.bf16.msra.mxu0 %v1316
    %1643 = vmatpush.bf16.msra.mxu0 %v1312
    %1644 = vmatpush.bf16.msra.mxu0 %v1308
    %1645 = vmatpush.bf16.msra.mxu0 %v1304
    %1646 = vmatpush.bf16.msra.mxu0 %v1300
    %1647 = vmatmul.bf16.gmra.mxu0 %v741
    %v1648 = vpop.f32.mrf.mxu0
    %v1649 = vadd.f32 %v1636, %v1648
    %v1650 = vpop.f32.mrf.mxu0
    %1651 = vdwg.mxu0
    %1652 = vmatpush.bf16.msra.mxu0 %v1360
    %1653 = vmatpush.bf16.msra.mxu0 %v1356
    %1654 = vmatpush.bf16.msra.mxu0 %v1352
    %1655 = vmatpush.bf16.msra.mxu0 %v1348
    %1656 = vmatpush.bf16.msra.mxu0 %v1344
    %1657 = vmatpush.bf16.msra.mxu0 %v1340
    %1658 = vmatpush.bf16.msra.mxu0 %v1336
    %1659 = vmatpush.bf16.msra.mxu0 %v1332
    %1660 = vmatmul.bf16.gmra.mxu0 %v742
    %v1661 = vpop.f32.mrf.mxu0
    %v1662 = vadd.f32 %v1649, %v1661
    %v1663 = vpop.f32.mrf.mxu0
    %1664 = vdwg.mxu0
    %1665 = vmatpush.bf16.msra.mxu0 %v1392
    %1666 = vmatpush.bf16.msra.mxu0 %v1388
    %1667 = vmatpush.bf16.msra.mxu0 %v1384
    %1668 = vmatpush.bf16.msra.mxu0 %v1380
    %1669 = vmatpush.bf16.msra.mxu0 %v1376
    %1670 = vmatpush.bf16.msra.mxu0 %v1372
    %1671 = vmatpush.bf16.msra.mxu0 %v1368
    %1672 = vmatpush.bf16.msra.mxu0 %v1364
    %1673 = vmatmul.bf16.gmra.mxu0 %v743
    %v1674 = vpop.f32.mrf.mxu0
    %v1675 = vadd.f32 %v1662, %v1674
    %v1676 = vpop.f32.mrf.mxu0
    %1677 = vdwg.mxu0
    %1678 = vmatpush.bf16.msra.mxu0 %v1297
    %1679 = vmatpush.bf16.msra.mxu0 %v1293
    %1680 = vmatpush.bf16.msra.mxu0 %v1289
    %1681 = vmatpush.bf16.msra.mxu0 %v1285
    %1682 = vmatpush.bf16.msra.mxu0 %v1281
    %1683 = vmatpush.bf16.msra.mxu0 %v1277
    %1684 = vmatpush.bf16.msra.mxu0 %v1273
    %1685 = vmatpush.bf16.msra.mxu0 %v1269
    %1686 = vmatmul.bf16.gmra.mxu0 %v740
    %v1687 = vpop.f32.mrf.mxu0
    %v1688 = vadd.f32 %v877, %v1687
    %v1689 = vpop.f32.mrf.mxu0
    %1690 = vdwg.mxu0
    %1691 = vmatpush.bf16.msra.mxu0 %v1329
    %1692 = vmatpush.bf16.msra.mxu0 %v1325
    %1693 = vmatpush.bf16.msra.mxu0 %v1321
    %1694 = vmatpush.bf16.msra.mxu0 %v1317
    %1695 = vmatpush.bf16.msra.mxu0 %v1313
    %1696 = vmatpush.bf16.msra.mxu0 %v1309
    %1697 = vmatpush.bf16.msra.mxu0 %v1305
    %1698 = vmatpush.bf16.msra.mxu0 %v1301
    %1699 = vmatmul.bf16.gmra.mxu0 %v741
    %v1700 = vpop.f32.mrf.mxu0
    %v1701 = vadd.f32 %v1688, %v1700
    %v1702 = vpop.f32.mrf.mxu0
    %1703 = vdwg.mxu0
    %1704 = vmatpush.bf16.msra.mxu0 %v1361
    %1705 = vmatpush.bf16.msra.mxu0 %v1357
    %1706 = vmatpush.bf16.msra.mxu0 %v1353
    %1707 = vmatpush.bf16.msra.mxu0 %v1349
    %1708 = vmatpush.bf16.msra.mxu0 %v1345
    %1709 = vmatpush.bf16.msra.mxu0 %v1341
    %1710 = vmatpush.bf16.msra.mxu0 %v1337
    %1711 = vmatpush.bf16.msra.mxu0 %v1333
    %1712 = vmatmul.bf16.gmra.mxu0 %v742
    %v1713 = vpop.f32.mrf.mxu0
    %v1714 = vadd.f32 %v1701, %v1713
    %v1715 = vpop.f32.mrf.mxu0
    %1716 = vdwg.mxu0
    %1717 = vmatpush.bf16.msra.mxu0 %v1393
    %1718 = vmatpush.bf16.msra.mxu0 %v1389
    %1719 = vmatpush.bf16.msra.mxu0 %v1385
    %1720 = vmatpush.bf16.msra.mxu0 %v1381
    %1721 = vmatpush.bf16.msra.mxu0 %v1377
    %1722 = vmatpush.bf16.msra.mxu0 %v1373
    %1723 = vmatpush.bf16.msra.mxu0 %v1369
    %1724 = vmatpush.bf16.msra.mxu0 %v1365
    %1725 = vmatmul.bf16.gmra.mxu0 %v743
    %v1726 = vpop.f32.mrf.mxu0
    %v1727 = vadd.f32 %v1714, %v1726
    %v1728 = vpop.f32.mrf.mxu0
    %1729 = vdwg.mxu0
    %v1730 = vld [vmem:[#allocation5] sm:$0xf]
    %1732 = vst [vmem:[#allocation1] ss:$4 sm:$0xff] %v1730
    %v1733 = vld.sshfl [vmem:[#allocation1] sm:$0xff pattern:$0x73625140]
    %v1734 = vld.sshfl [vmem:[#allocation1 + $0x8] sm:$0xff pattern:$0x73625140]
    %v1737 = vpack.c.bf16 %v1733, %v1733
    %v1738 = vpack.c.bf16 %v1734, %v1734
    %v1739 = vld [vmem:[#allocation11] sm:$0xff]
    %v1740 = vld [vmem:[#allocation11 + $0x8] sm:$0xff]
    %v1741 = vld [vmem:[#allocation11 + $0x10] sm:$0xff]
    %v1742 = vld [vmem:[#allocation11 + $0x18] sm:$0xff]
    %v1743 = vld [vmem:[#allocation11 + $0x20] sm:$0xff]
    %v1744 = vld [vmem:[#allocation11 + $0x28] sm:$0xff]
    %v1745 = vld [vmem:[#allocation11 + $0x30] sm:$0xff]
    %v1746 = vld [vmem:[#allocation11 + $0x38] sm:$0xff]
    %v1747 = vld [vmem:[#allocation11 + $0x40] sm:$0xff]
    %v1748 = vld [vmem:[#allocation11 + $0x48] sm:$0xff]
    %v1749 = vld [vmem:[#allocation11 + $0x50] sm:$0xff]
    %v1750 = vld [vmem:[#allocation11 + $0x58] sm:$0xff]
    %v1751 = vld [vmem:[#allocation11 + $0x60] sm:$0xff]
    %v1752 = vld [vmem:[#allocation11 + $0x68] sm:$0xff]
    %v1753 = vld [vmem:[#allocation11 + $0x70] sm:$0xff]
    %v1754 = vld [vmem:[#allocation11 + $0x78] sm:$0xff]
    %v1755 = vld [vmem:[#allocation11 + $0x80] sm:$0xff]
    %v1756 = vld [vmem:[#allocation11 + $0x88] sm:$0xff]
    %v1757 = vld [vmem:[#allocation11 + $0x90] sm:$0xff]
    %v1758 = vld [vmem:[#allocation11 + $0x98] sm:$0xff]
    %v1759 = vld [vmem:[#allocation11 + $0xa0] sm:$0xff]
    %v1760 = vld [vmem:[#allocation11 + $0xa8] sm:$0xff]
    %v1761 = vld [vmem:[#allocation11 + $0xb0] sm:$0xff]
    %v1762 = vld [vmem:[#allocation11 + $0xb8] sm:$0xff]
    %v1763 = vld [vmem:[#allocation11 + $0xc0] sm:$0xff]
    %v1764 = vld [vmem:[#allocation11 + $0xc8] sm:$0xff]
    %v1765 = vld [vmem:[#allocation11 + $0xd0] sm:$0xff]
    %v1766 = vld [vmem:[#allocation11 + $0xd8] sm:$0xff]
    %v1767 = vld [vmem:[#allocation11 + $0xe0] sm:$0xff]
    %v1768 = vld [vmem:[#allocation11 + $0xe8] sm:$0xff]
    %v1769 = vld [vmem:[#allocation11 + $0xf0] sm:$0xff]
    %v1770 = vld [vmem:[#allocation11 + $0xf8] sm:$0xff]
    %v1771 = vld [vmem:[#allocation11 + $0x100] sm:$0xff]
    %v1772 = vld [vmem:[#allocation11 + $0x108] sm:$0xff]
    %v1773 = vld [vmem:[#allocation11 + $0x110] sm:$0xff]
    %v1774 = vld [vmem:[#allocation11 + $0x118] sm:$0xff]
    %v1775 = vld [vmem:[#allocation11 + $0x120] sm:$0xff]
    %v1776 = vld [vmem:[#allocation11 + $0x128] sm:$0xff]
    %v1777 = vld [vmem:[#allocation11 + $0x130] sm:$0xff]
    %v1778 = vld [vmem:[#allocation11 + $0x138] sm:$0xff]
    %v1779 = vld [vmem:[#allocation11 + $0x140] sm:$0xff]
    %v1780 = vld [vmem:[#allocation11 + $0x148] sm:$0xff]
    %v1781 = vld [vmem:[#allocation11 + $0x150] sm:$0xff]
    %v1782 = vld [vmem:[#allocation11 + $0x158] sm:$0xff]
    %v1783 = vld [vmem:[#allocation11 + $0x160] sm:$0xff]
    %v1784 = vld [vmem:[#allocation11 + $0x168] sm:$0xff]
    %v1785 = vld [vmem:[#allocation11 + $0x170] sm:$0xff]
    %v1786 = vld [vmem:[#allocation11 + $0x178] sm:$0xff]
    %v1787 = vld [vmem:[#allocation11 + $0x180] sm:$0xff]
    %v1788 = vld [vmem:[#allocation11 + $0x188] sm:$0xff]
    %v1789 = vld [vmem:[#allocation11 + $0x190] sm:$0xff]
    %v1790 = vld [vmem:[#allocation11 + $0x198] sm:$0xff]
    %v1791 = vld [vmem:[#allocation11 + $0x1a0] sm:$0xff]
    %v1792 = vld [vmem:[#allocation11 + $0x1a8] sm:$0xff]
    %v1793 = vld [vmem:[#allocation11 + $0x1b0] sm:$0xff]
    %v1794 = vld [vmem:[#allocation11 + $0x1b8] sm:$0xff]
    %v1795 = vld [vmem:[#allocation11 + $0x1c0] sm:$0xff]
    %v1796 = vld [vmem:[#allocation11 + $0x1c8] sm:$0xff]
    %v1797 = vld [vmem:[#allocation11 + $0x1d0] sm:$0xff]
    %v1798 = vld [vmem:[#allocation11 + $0x1d8] sm:$0xff]
    %v1799 = vld [vmem:[#allocation11 + $0x1e0] sm:$0xff]
    %v1800 = vld [vmem:[#allocation11 + $0x1e8] sm:$0xff]
    %v1801 = vld [vmem:[#allocation11 + $0x1f0] sm:$0xff]
    %v1802 = vld [vmem:[#allocation11 + $0x1f8] sm:$0xff]
    %v1803 = vld [vmem:[#allocation13] sm:$0xf]
    %v1805 = vperm.slane %v1803, 0
    %v1806 = vperm.slane %v1803, 1
    %v1807 = vperm.slane %v1803, 2
    %v1808 = vperm.slane %v1803, 3
    %v1877 = vunpack.c.l.b16 %v1739
    %v1878 = vunpack.c.h.b16 %v1739
    %v1879 = vunpack.c.l.b16 %v1740
    %v1880 = vunpack.c.h.b16 %v1740
    %v1881 = vunpack.c.l.b16 %v1741
    %v1882 = vunpack.c.h.b16 %v1741
    %v1883 = vunpack.c.l.b16 %v1742
    %v1884 = vunpack.c.h.b16 %v1742
    %v1885 = vunpack.c.l.b16 %v1743
    %v1886 = vunpack.c.h.b16 %v1743
    %v1887 = vunpack.c.l.b16 %v1744
    %v1888 = vunpack.c.h.b16 %v1744
    %v1889 = vunpack.c.l.b16 %v1745
    %v1890 = vunpack.c.h.b16 %v1745
    %v1891 = vunpack.c.l.b16 %v1746
    %v1892 = vunpack.c.h.b16 %v1746
    %v1893 = vunpack.c.l.b16 %v1747
    %v1894 = vunpack.c.h.b16 %v1747
    %v1895 = vunpack.c.l.b16 %v1748
    %v1896 = vunpack.c.h.b16 %v1748
    %v1897 = vunpack.c.l.b16 %v1749
    %v1898 = vunpack.c.h.b16 %v1749
    %v1899 = vunpack.c.l.b16 %v1750
    %v1900 = vunpack.c.h.b16 %v1750
    %v1901 = vunpack.c.l.b16 %v1751
    %v1902 = vunpack.c.h.b16 %v1751
    %v1903 = vunpack.c.l.b16 %v1752
    %v1904 = vunpack.c.h.b16 %v1752
    %v1905 = vunpack.c.l.b16 %v1753
    %v1906 = vunpack.c.h.b16 %v1753
    %v1907 = vunpack.c.l.b16 %v1754
    %v1908 = vunpack.c.h.b16 %v1754
    %v1909 = vunpack.c.l.b16 %v1755
    %v1910 = vunpack.c.h.b16 %v1755
    %v1911 = vunpack.c.l.b16 %v1756
    %v1912 = vunpack.c.h.b16 %v1756
    %v1913 = vunpack.c.l.b16 %v1757
    %v1914 = vunpack.c.h.b16 %v1757
    %v1915 = vunpack.c.l.b16 %v1758
    %v1916 = vunpack.c.h.b16 %v1758
    %v1917 = vunpack.c.l.b16 %v1759
    %v1918 = vunpack.c.h.b16 %v1759
    %v1919 = vunpack.c.l.b16 %v1760
    %v1920 = vunpack.c.h.b16 %v1760
    %v1921 = vunpack.c.l.b16 %v1761
    %v1922 = vunpack.c.h.b16 %v1761
    %v1923 = vunpack.c.l.b16 %v1762
    %v1924 = vunpack.c.h.b16 %v1762
    %v1925 = vunpack.c.l.b16 %v1763
    %v1926 = vunpack.c.h.b16 %v1763
    %v1927 = vunpack.c.l.b16 %v1764
    %v1928 = vunpack.c.h.b16 %v1764
    %v1929 = vunpack.c.l.b16 %v1765
    %v1930 = vunpack.c.h.b16 %v1765
    %v1931 = vunpack.c.l.b16 %v1766
    %v1932 = vunpack.c.h.b16 %v1766
    %v1933 = vunpack.c.l.b16 %v1767
    %v1934 = vunpack.c.h.b16 %v1767
    %v1935 = vunpack.c.l.b16 %v1768
    %v1936 = vunpack.c.h.b16 %v1768
    %v1937 = vunpack.c.l.b16 %v1769
    %v1938 = vunpack.c.h.b16 %v1769
    %v1939 = vunpack.c.l.b16 %v1770
    %v1940 = vunpack.c.h.b16 %v1770
    %v1941 = vunpack.c.l.b16 %v1771
    %v1942 = vunpack.c.h.b16 %v1771
    %v1943 = vunpack.c.l.b16 %v1772
    %v1944 = vunpack.c.h.b16 %v1772
    %v1945 = vunpack.c.l.b16 %v1773
    %v1946 = vunpack.c.h.b16 %v1773
    %v1947 = vunpack.c.l.b16 %v1774
    %v1948 = vunpack.c.h.b16 %v1774
    %v1949 = vunpack.c.l.b16 %v1775
    %v1950 = vunpack.c.h.b16 %v1775
    %v1951 = vunpack.c.l.b16 %v1776
    %v1952 = vunpack.c.h.b16 %v1776
    %v1953 = vunpack.c.l.b16 %v1777
    %v1954 = vunpack.c.h.b16 %v1777
    %v1955 = vunpack.c.l.b16 %v1778
    %v1956 = vunpack.c.h.b16 %v1778
    %v1957 = vunpack.c.l.b16 %v1779
    %v1958 = vunpack.c.h.b16 %v1779
    %v1959 = vunpack.c.l.b16 %v1780
    %v1960 = vunpack.c.h.b16 %v1780
    %v1961 = vunpack.c.l.b16 %v1781
    %v1962 = vunpack.c.h.b16 %v1781
    %v1963 = vunpack.c.l.b16 %v1782
    %v1964 = vunpack.c.h.b16 %v1782
    %v1965 = vunpack.c.l.b16 %v1783
    %v1966 = vunpack.c.h.b16 %v1783
    %v1967 = vunpack.c.l.b16 %v1784
    %v1968 = vunpack.c.h.b16 %v1784
    %v1969 = vunpack.c.l.b16 %v1785
    %v1970 = vunpack.c.h.b16 %v1785
    %v1971 = vunpack.c.l.b16 %v1786
    %v1972 = vunpack.c.h.b16 %v1786
    %v1973 = vunpack.c.l.b16 %v1787
    %v1974 = vunpack.c.h.b16 %v1787
    %v1975 = vunpack.c.l.b16 %v1788
    %v1976 = vunpack.c.h.b16 %v1788
    %v1977 = vunpack.c.l.b16 %v1789
    %v1978 = vunpack.c.h.b16 %v1789
    %v1979 = vunpack.c.l.b16 %v1790
    %v1980 = vunpack.c.h.b16 %v1790
    %v1981 = vunpack.c.l.b16 %v1791
    %v1982 = vunpack.c.h.b16 %v1791
    %v1983 = vunpack.c.l.b16 %v1792
    %v1984 = vunpack.c.h.b16 %v1792
    %v1985 = vunpack.c.l.b16 %v1793
    %v1986 = vunpack.c.h.b16 %v1793
    %v1987 = vunpack.c.l.b16 %v1794
    %v1988 = vunpack.c.h.b16 %v1794
    %v1989 = vunpack.c.l.b16 %v1795
    %v1990 = vunpack.c.h.b16 %v1795
    %v1991 = vunpack.c.l.b16 %v1796
    %v1992 = vunpack.c.h.b16 %v1796
    %v1993 = vunpack.c.l.b16 %v1797
    %v1994 = vunpack.c.h.b16 %v1797
    %v1995 = vunpack.c.l.b16 %v1798
    %v1996 = vunpack.c.h.b16 %v1798
    %v1997 = vunpack.c.l.b16 %v1799
    %v1998 = vunpack.c.h.b16 %v1799
    %v1999 = vunpack.c.l.b16 %v1800
    %v2000 = vunpack.c.h.b16 %v1800
    %v2001 = vunpack.c.l.b16 %v1801
    %v2002 = vunpack.c.h.b16 %v1801
    %v2003 = vunpack.c.l.b16 %v1802
    %v2004 = vunpack.c.h.b16 %v1802
    %v2005 = vpack.c.b16 %v1881, %v1877
    %v2006 = vpack.c.b16 %v1882, %v1878
    %v2007 = vpack.c.b16 %v1883, %v1879
    %v2008 = vpack.c.b16 %v1884, %v1880
    %v2009 = vpack.c.b16 %v1889, %v1885
    %v2010 = vpack.c.b16 %v1890, %v1886
    %v2011 = vpack.c.b16 %v1891, %v1887
    %v2012 = vpack.c.b16 %v1892, %v1888
    %v2013 = vpack.c.b16 %v1897, %v1893
    %v2014 = vpack.c.b16 %v1898, %v1894
    %v2015 = vpack.c.b16 %v1899, %v1895
    %v2016 = vpack.c.b16 %v1900, %v1896
    %v2017 = vpack.c.b16 %v1905, %v1901
    %v2018 = vpack.c.b16 %v1906, %v1902
    %v2019 = vpack.c.b16 %v1907, %v1903
    %v2020 = vpack.c.b16 %v1908, %v1904
    %v2021 = vpack.c.b16 %v1913, %v1909
    %v2022 = vpack.c.b16 %v1914, %v1910
    %v2023 = vpack.c.b16 %v1915, %v1911
    %v2024 = vpack.c.b16 %v1916, %v1912
    %v2025 = vpack.c.b16 %v1921, %v1917
    %v2026 = vpack.c.b16 %v1922, %v1918
    %v2027 = vpack.c.b16 %v1923, %v1919
    %v2028 = vpack.c.b16 %v1924, %v1920
    %v2029 = vpack.c.b16 %v1929, %v1925
    %v2030 = vpack.c.b16 %v1930, %v1926
    %v2031 = vpack.c.b16 %v1931, %v1927
    %v2032 = vpack.c.b16 %v1932, %v1928
    %v2033 = vpack.c.b16 %v1937, %v1933
    %v2034 = vpack.c.b16 %v1938, %v1934
    %v2035 = vpack.c.b16 %v1939, %v1935
    %v2036 = vpack.c.b16 %v1940, %v1936
    %v2037 = vpack.c.b16 %v1945, %v1941
    %v2038 = vpack.c.b16 %v1946, %v1942
    %v2039 = vpack.c.b16 %v1947, %v1943
    %v2040 = vpack.c.b16 %v1948, %v1944
    %v2041 = vpack.c.b16 %v1953, %v1949
    %v2042 = vpack.c.b16 %v1954, %v1950
    %v2043 = vpack.c.b16 %v1955, %v1951
    %v2044 = vpack.c.b16 %v1956, %v1952
    %v2045 = vpack.c.b16 %v1961, %v1957
    %v2046 = vpack.c.b16 %v1962, %v1958
    %v2047 = vpack.c.b16 %v1963, %v1959
    %v2048 = vpack.c.b16 %v1964, %v1960
    %v2049 = vpack.c.b16 %v1969, %v1965
    %v2050 = vpack.c.b16 %v1970, %v1966
    %v2051 = vpack.c.b16 %v1971, %v1967
    %v2052 = vpack.c.b16 %v1972, %v1968
    %v2053 = vpack.c.b16 %v1977, %v1973
    %v2054 = vpack.c.b16 %v1978, %v1974
    %v2055 = vpack.c.b16 %v1979, %v1975
    %v2056 = vpack.c.b16 %v1980, %v1976
    %v2057 = vpack.c.b16 %v1985, %v1981
    %v2058 = vpack.c.b16 %v1986, %v1982
    %v2059 = vpack.c.b16 %v1987, %v1983
    %v2060 = vpack.c.b16 %v1988, %v1984
    %v2061 = vpack.c.b16 %v1993, %v1989
    %v2062 = vpack.c.b16 %v1994, %v1990
    %v2063 = vpack.c.b16 %v1995, %v1991
    %v2064 = vpack.c.b16 %v1996, %v1992
    %v2065 = vpack.c.b16 %v2001, %v1997
    %v2066 = vpack.c.b16 %v2002, %v1998
    %v2067 = vpack.c.b16 %v2003, %v1999
    %v2068 = vpack.c.b16 %v2004, %v2000
    %2133 = vmatpush.bf16.msra.mxu0 %v2033
    %2134 = vmatpush.bf16.msra.mxu0 %v2029
    %2135 = vmatpush.bf16.msra.mxu0 %v2025
    %2136 = vmatpush.bf16.msra.mxu0 %v2021
    %2137 = vmatpush.bf16.msra.mxu0 %v2017
    %2138 = vmatpush.bf16.msra.mxu0 %v2013
    %2139 = vmatpush.bf16.msra.mxu0 %v2009
    %2140 = vmatpush.bf16.msra.mxu0 %v2005
    %2141 = vmatmul.bf16.gmra.mxu0 %v1737
    %v2142 = vpop.f32.mrf.mxu0
    %v2143 = vadd.f32 %v1805, %v2142
    %v2144 = vpop.f32.mrf.mxu0
    %2145 = vdwg.mxu0
    %2146 = vmatpush.bf16.msra.mxu0 %v2065
    %2147 = vmatpush.bf16.msra.mxu0 %v2061
    %2148 = vmatpush.bf16.msra.mxu0 %v2057
    %2149 = vmatpush.bf16.msra.mxu0 %v2053
    %2150 = vmatpush.bf16.msra.mxu0 %v2049
    %2151 = vmatpush.bf16.msra.mxu0 %v2045
    %2152 = vmatpush.bf16.msra.mxu0 %v2041
    %2153 = vmatpush.bf16.msra.mxu0 %v2037
    %2154 = vmatmul.bf16.gmra.mxu0 %v1738
    %v2155 = vpop.f32.mrf.mxu0
    %v2156 = vadd.f32 %v2143, %v2155
    %v2157 = vpop.f32.mrf.mxu0
    %2158 = vdwg.mxu0
    %2159 = vmatpush.bf16.msra.mxu0 %v2034
    %2160 = vmatpush.bf16.msra.mxu0 %v2030
    %2161 = vmatpush.bf16.msra.mxu0 %v2026
    %2162 = vmatpush.bf16.msra.mxu0 %v2022
    %2163 = vmatpush.bf16.msra.mxu0 %v2018
    %2164 = vmatpush.bf16.msra.mxu0 %v2014
    %2165 = vmatpush.bf16.msra.mxu0 %v2010
    %2166 = vmatpush.bf16.msra.mxu0 %v2006
    %2167 = vmatmul.bf16.gmra.mxu0 %v1737
    %v2168 = vpop.f32.mrf.mxu0
    %v2169 = vadd.f32 %v1806, %v2168
    %v2170 = vpop.f32.mrf.mxu0
    %2171 = vdwg.mxu0
    %2172 = vmatpush.bf16.msra.mxu0 %v2066
    %2173 = vmatpush.bf16.msra.mxu0 %v2062
    %2174 = vmatpush.bf16.msra.mxu0 %v2058
    %2175 = vmatpush.bf16.msra.mxu0 %v2054
    %2176 = vmatpush.bf16.msra.mxu0 %v2050
    %2177 = vmatpush.bf16.msra.mxu0 %v2046
    %2178 = vmatpush.bf16.msra.mxu0 %v2042
    %2179 = vmatpush.bf16.msra.mxu0 %v2038
    %2180 = vmatmul.bf16.gmra.mxu0 %v1738
    %v2181 = vpop.f32.mrf.mxu0
    %v2182 = vadd.f32 %v2169, %v2181
    %v2183 = vpop.f32.mrf.mxu0
    %2184 = vdwg.mxu0
    %2185 = vmatpush.bf16.msra.mxu0 %v2035
    %2186 = vmatpush.bf16.msra.mxu0 %v2031
    %2187 = vmatpush.bf16.msra.mxu0 %v2027
    %2188 = vmatpush.bf16.msra.mxu0 %v2023
    %2189 = vmatpush.bf16.msra.mxu0 %v2019
    %2190 = vmatpush.bf16.msra.mxu0 %v2015
    %2191 = vmatpush.bf16.msra.mxu0 %v2011
    %2192 = vmatpush.bf16.msra.mxu0 %v2007
    %2193 = vmatmul.bf16.gmra.mxu0 %v1737
    %v2194 = vpop.f32.mrf.mxu0
    %v2195 = vadd.f32 %v1807, %v2194
    %v2196 = vpop.f32.mrf.mxu0
    %2197 = vdwg.mxu0
    %2198 = vmatpush.bf16.msra.mxu0 %v2067
    %2199 = vmatpush.bf16.msra.mxu0 %v2063
    %2200 = vmatpush.bf16.msra.mxu0 %v2059
    %2201 = vmatpush.bf16.msra.mxu0 %v2055
    %2202 = vmatpush.bf16.msra.mxu0 %v2051
    %2203 = vmatpush.bf16.msra.mxu0 %v2047
    %2204 = vmatpush.bf16.msra.mxu0 %v2043
    %2205 = vmatpush.bf16.msra.mxu0 %v2039
    %2206 = vmatmul.bf16.gmra.mxu0 %v1738
    %v2207 = vpop.f32.mrf.mxu0
    %v2208 = vadd.f32 %v2195, %v2207
    %v2209 = vpop.f32.mrf.mxu0
    %2210 = vdwg.mxu0
    %2211 = vmatpush.bf16.msra.mxu0 %v2036
    %2212 = vmatpush.bf16.msra.mxu0 %v2032
    %2213 = vmatpush.bf16.msra.mxu0 %v2028
    %2214 = vmatpush.bf16.msra.mxu0 %v2024
    %2215 = vmatpush.bf16.msra.mxu0 %v2020
    %2216 = vmatpush.bf16.msra.mxu0 %v2016
    %2217 = vmatpush.bf16.msra.mxu0 %v2012
    %2218 = vmatpush.bf16.msra.mxu0 %v2008
    %2219 = vmatmul.bf16.gmra.mxu0 %v1737
    %v2220 = vpop.f32.mrf.mxu0
    %v2221 = vadd.f32 %v1808, %v2220
    %v2222 = vpop.f32.mrf.mxu0
    %2223 = vdwg.mxu0
    %2224 = vmatpush.bf16.msra.mxu0 %v2068
    %2225 = vmatpush.bf16.msra.mxu0 %v2064
    %2226 = vmatpush.bf16.msra.mxu0 %v2060
    %2227 = vmatpush.bf16.msra.mxu0 %v2056
    %2228 = vmatpush.bf16.msra.mxu0 %v2052
    %2229 = vmatpush.bf16.msra.mxu0 %v2048
    %2230 = vmatpush.bf16.msra.mxu0 %v2044
    %2231 = vmatpush.bf16.msra.mxu0 %v2040
    %2232 = vmatmul.bf16.gmra.mxu0 %v1738
    %v2233 = vpop.f32.mrf.mxu0
    %v2234 = vadd.f32 %v2221, %v2233
    %v2235 = vpop.f32.mrf.mxu0
    %2236 = vdwg.mxu0
    %v2237 = vsub.f32 0.0, %v2156
    %v2238 = vsub.f32 0.0, %v2182
    %v2239 = vsub.f32 0.0, %v2208
    %v2240 = vsub.f32 0.0, %v2234
    %v2241 = vmul.f32 %v2237, 1.442695
    %v2242 = vpow.pop %v2241
    %v2243 = vmul.f32 %v2238, 1.442695
    %v2244 = vpow.pop %v2243
    %v2245 = vmul.f32 %v2239, 1.442695
    %v2246 = vpow.pop %v2245
    %v2247 = vmul.f32 %v2240, 1.442695
    %v2248 = vpow.pop %v2247
    %v2249 = vadd.f32 %v2242, 1.0
    %v2250 = vadd.f32 %v2244, 1.0
    %v2251 = vadd.f32 %v2246, 1.0
    %v2252 = vadd.f32 %v2248, 1.0
    %v2253 = vrcp.pop %v2249
    %v2254 = vmul.f32 %v2249, %v2253
    %v2255 = vsub.f32 1.0, %v2254
    %v2256 = vmul.f32 %v2253, %v2255
    %v2257 = vadd.f32 %v2253, %v2256
    %vm2258 = vweird.f32 %v2249
    %vm2259 = vweird.f32 %v2253
    %vm2260 = vmor %vm2258, %vm2259
    %v2261 = vsel %vm2260, %v2253, %v2257
    %v2262 = vand.u32 2147483647, %v2249
    %vm2263 = vcmp.eq.f32.partialorder %v2262, 8.507059e+37
    %v2264 = vand.u32 %v2249, 2147483648
    %v2265 = vor.u32 1.1754944e-38, %v2264
    %v2266 = vsel %vm2263, %v2265, %v2261
    %v2267 = vmul.f32 1.0, %v2266
    %v2268 = vrcp.pop %v2250
    %v2269 = vmul.f32 %v2250, %v2268
    %v2270 = vsub.f32 1.0, %v2269
    %v2271 = vmul.f32 %v2268, %v2270
    %v2272 = vadd.f32 %v2268, %v2271
    %vm2273 = vweird.f32 %v2250
    %vm2274 = vweird.f32 %v2268
    %vm2275 = vmor %vm2273, %vm2274
    %v2276 = vsel %vm2275, %v2268, %v2272
    %v2277 = vand.u32 2147483647, %v2250
    %vm2278 = vcmp.eq.f32.partialorder %v2277, 8.507059e+37
    %v2279 = vand.u32 %v2250, 2147483648
    %v2280 = vor.u32 1.1754944e-38, %v2279
    %v2281 = vsel %vm2278, %v2280, %v2276
    %v2282 = vmul.f32 1.0, %v2281
    %v2283 = vrcp.pop %v2251
    %v2284 = vmul.f32 %v2251, %v2283
    %v2285 = vsub.f32 1.0, %v2284
    %v2286 = vmul.f32 %v2283, %v2285
    %v2287 = vadd.f32 %v2283, %v2286
    %vm2288 = vweird.f32 %v2251
    %vm2289 = vweird.f32 %v2283
    %vm2290 = vmor %vm2288, %vm2289
    %v2291 = vsel %vm2290, %v2283, %v2287
    %v2292 = vand.u32 2147483647, %v2251
    %vm2293 = vcmp.eq.f32.partialorder %v2292, 8.507059e+37
    %v2294 = vand.u32 %v2251, 2147483648
    %v2295 = vor.u32 1.1754944e-38, %v2294
    %v2296 = vsel %vm2293, %v2295, %v2291
    %v2297 = vmul.f32 1.0, %v2296
    %v2298 = vrcp.pop %v2252
    %v2299 = vmul.f32 %v2252, %v2298
    %v2300 = vsub.f32 1.0, %v2299
    %v2301 = vmul.f32 %v2298, %v2300
    %v2302 = vadd.f32 %v2298, %v2301
    %vm2303 = vweird.f32 %v2252
    %vm2304 = vweird.f32 %v2298
    %vm2305 = vmor %vm2303, %vm2304
    %v2306 = vsel %vm2305, %v2298, %v2302
    %v2307 = vand.u32 2147483647, %v2252
    %vm2308 = vcmp.eq.f32.partialorder %v2307, 8.507059e+37
    %v2309 = vand.u32 %v2252, 2147483648
    %v2310 = vor.u32 1.1754944e-38, %v2309
    %v2311 = vsel %vm2308, %v2310, %v2306
    %v2312 = vmul.f32 1.0, %v2311
    %v2313 = vmul.f32 %v2156, %v2267
    %v2314 = vmul.f32 %v2182, %v2282
    %v2315 = vmul.f32 %v2208, %v2297
    %v2316 = vmul.f32 %v2234, %v2312
    %v2317 = vpack.c.bf16 %v2313, %v2313
    %v2318 = vpack.c.bf16 %v2314, %v2314
    %v2319 = vpack.c.bf16 %v2315, %v2315
    %v2320 = vpack.c.bf16 %v2316, %v2316
    %v2321 = vld [vmem:[#allocation14] sm:$0xff]
    %v2322 = vld [vmem:[#allocation14 + $0x8] sm:$0xff]
    %v2323 = vld [vmem:[#allocation14 + $0x10] sm:$0xff]
    %v2324 = vld [vmem:[#allocation14 + $0x18] sm:$0xff]
    %v2325 = vld [vmem:[#allocation14 + $0x20] sm:$0xff]
    %v2326 = vld [vmem:[#allocation14 + $0x28] sm:$0xff]
    %v2327 = vld [vmem:[#allocation14 + $0x30] sm:$0xff]
    %v2328 = vld [vmem:[#allocation14 + $0x38] sm:$0xff]
    %v2329 = vld [vmem:[#allocation14 + $0x40] sm:$0xff]
    %v2330 = vld [vmem:[#allocation14 + $0x48] sm:$0xff]
    %v2331 = vld [vmem:[#allocation14 + $0x50] sm:$0xff]
    %v2332 = vld [vmem:[#allocation14 + $0x58] sm:$0xff]
    %v2333 = vld [vmem:[#allocation14 + $0x60] sm:$0xff]
    %v2334 = vld [vmem:[#allocation14 + $0x68] sm:$0xff]
    %v2335 = vld [vmem:[#allocation14 + $0x70] sm:$0xff]
    %v2336 = vld [vmem:[#allocation14 + $0x78] sm:$0xff]
    %v2337 = vld [vmem:[#allocation14 + $0x80] sm:$0xff]
    %v2338 = vld [vmem:[#allocation14 + $0x88] sm:$0xff]
    %v2339 = vld [vmem:[#allocation14 + $0x90] sm:$0xff]
    %v2340 = vld [vmem:[#allocation14 + $0x98] sm:$0xff]
    %v2341 = vld [vmem:[#allocation14 + $0xa0] sm:$0xff]
    %v2342 = vld [vmem:[#allocation14 + $0xa8] sm:$0xff]
    %v2343 = vld [vmem:[#allocation14 + $0xb0] sm:$0xff]
    %v2344 = vld [vmem:[#allocation14 + $0xb8] sm:$0xff]
    %v2345 = vld [vmem:[#allocation14 + $0xc0] sm:$0xff]
    %v2346 = vld [vmem:[#allocation14 + $0xc8] sm:$0xff]
    %v2347 = vld [vmem:[#allocation14 + $0xd0] sm:$0xff]
    %v2348 = vld [vmem:[#allocation14 + $0xd8] sm:$0xff]
    %v2349 = vld [vmem:[#allocation14 + $0xe0] sm:$0xff]
    %v2350 = vld [vmem:[#allocation14 + $0xe8] sm:$0xff]
    %v2351 = vld [vmem:[#allocation14 + $0xf0] sm:$0xff]
    %v2352 = vld [vmem:[#allocation14 + $0xf8] sm:$0xff]
    %v2353 = vld [vmem:[#allocation14 + $0x100] sm:$0xff]
    %v2354 = vld [vmem:[#allocation14 + $0x108] sm:$0xff]
    %v2355 = vld [vmem:[#allocation14 + $0x110] sm:$0xff]
    %v2356 = vld [vmem:[#allocation14 + $0x118] sm:$0xff]
    %v2357 = vld [vmem:[#allocation14 + $0x120] sm:$0xff]
    %v2358 = vld [vmem:[#allocation14 + $0x128] sm:$0xff]
    %v2359 = vld [vmem:[#allocation14 + $0x130] sm:$0xff]
    %v2360 = vld [vmem:[#allocation14 + $0x138] sm:$0xff]
    %v2361 = vld [vmem:[#allocation14 + $0x140] sm:$0xff]
    %v2362 = vld [vmem:[#allocation14 + $0x148] sm:$0xff]
    %v2363 = vld [vmem:[#allocation14 + $0x150] sm:$0xff]
    %v2364 = vld [vmem:[#allocation14 + $0x158] sm:$0xff]
    %v2365 = vld [vmem:[#allocation14 + $0x160] sm:$0xff]
    %v2366 = vld [vmem:[#allocation14 + $0x168] sm:$0xff]
    %v2367 = vld [vmem:[#allocation14 + $0x170] sm:$0xff]
    %v2368 = vld [vmem:[#allocation14 + $0x178] sm:$0xff]
    %v2369 = vld [vmem:[#allocation14 + $0x180] sm:$0xff]
    %v2370 = vld [vmem:[#allocation14 + $0x188] sm:$0xff]
    %v2371 = vld [vmem:[#allocation14 + $0x190] sm:$0xff]
    %v2372 = vld [vmem:[#allocation14 + $0x198] sm:$0xff]
    %v2373 = vld [vmem:[#allocation14 + $0x1a0] sm:$0xff]
    %v2374 = vld [vmem:[#allocation14 + $0x1a8] sm:$0xff]
    %v2375 = vld [vmem:[#allocation14 + $0x1b0] sm:$0xff]
    %v2376 = vld [vmem:[#allocation14 + $0x1b8] sm:$0xff]
    %v2377 = vld [vmem:[#allocation14 + $0x1c0] sm:$0xff]
    %v2378 = vld [vmem:[#allocation14 + $0x1c8] sm:$0xff]
    %v2379 = vld [vmem:[#allocation14 + $0x1d0] sm:$0xff]
    %v2380 = vld [vmem:[#allocation14 + $0x1d8] sm:$0xff]
    %v2381 = vld [vmem:[#allocation14 + $0x1e0] sm:$0xff]
    %v2382 = vld [vmem:[#allocation14 + $0x1e8] sm:$0xff]
    %v2383 = vld [vmem:[#allocation14 + $0x1f0] sm:$0xff]
    %v2384 = vld [vmem:[#allocation14 + $0x1f8] sm:$0xff]
    %v2385 = vld [vmem:[#allocation14 + $0x200] sm:$0xff]
    %v2386 = vld [vmem:[#allocation14 + $0x208] sm:$0xff]
    %v2387 = vld [vmem:[#allocation14 + $0x210] sm:$0xff]
    %v2388 = vld [vmem:[#allocation14 + $0x218] sm:$0xff]
    %v2389 = vld [vmem:[#allocation14 + $0x220] sm:$0xff]
    %v2390 = vld [vmem:[#allocation14 + $0x228] sm:$0xff]
    %v2391 = vld [vmem:[#allocation14 + $0x230] sm:$0xff]
    %v2392 = vld [vmem:[#allocation14 + $0x238] sm:$0xff]
    %v2393 = vld [vmem:[#allocation14 + $0x240] sm:$0xff]
    %v2394 = vld [vmem:[#allocation14 + $0x248] sm:$0xff]
    %v2395 = vld [vmem:[#allocation14 + $0x250] sm:$0xff]
    %v2396 = vld [vmem:[#allocation14 + $0x258] sm:$0xff]
    %v2397 = vld [vmem:[#allocation14 + $0x260] sm:$0xff]
    %v2398 = vld [vmem:[#allocation14 + $0x268] sm:$0xff]
    %v2399 = vld [vmem:[#allocation14 + $0x270] sm:$0xff]
    %v2400 = vld [vmem:[#allocation14 + $0x278] sm:$0xff]
    %v2401 = vld [vmem:[#allocation14 + $0x280] sm:$0xff]
    %v2402 = vld [vmem:[#allocation14 + $0x288] sm:$0xff]
    %v2403 = vld [vmem:[#allocation14 + $0x290] sm:$0xff]
    %v2404 = vld [vmem:[#allocation14 + $0x298] sm:$0xff]
    %v2405 = vld [vmem:[#allocation14 + $0x2a0] sm:$0xff]
    %v2406 = vld [vmem:[#allocation14 + $0x2a8] sm:$0xff]
    %v2407 = vld [vmem:[#allocation14 + $0x2b0] sm:$0xff]
    %v2408 = vld [vmem:[#allocation14 + $0x2b8] sm:$0xff]
    %v2409 = vld [vmem:[#allocation14 + $0x2c0] sm:$0xff]
    %v2410 = vld [vmem:[#allocation14 + $0x2c8] sm:$0xff]
    %v2411 = vld [vmem:[#allocation14 + $0x2d0] sm:$0xff]
    %v2412 = vld [vmem:[#allocation14 + $0x2d8] sm:$0xff]
    %v2413 = vld [vmem:[#allocation14 + $0x2e0] sm:$0xff]
    %v2414 = vld [vmem:[#allocation14 + $0x2e8] sm:$0xff]
    %v2415 = vld [vmem:[#allocation14 + $0x2f0] sm:$0xff]
    %v2416 = vld [vmem:[#allocation14 + $0x2f8] sm:$0xff]
    %v2417 = vld [vmem:[#allocation14 + $0x300] sm:$0xff]
    %v2418 = vld [vmem:[#allocation14 + $0x308] sm:$0xff]
    %v2419 = vld [vmem:[#allocation14 + $0x310] sm:$0xff]
    %v2420 = vld [vmem:[#allocation14 + $0x318] sm:$0xff]
    %v2421 = vld [vmem:[#allocation14 + $0x320] sm:$0xff]
    %v2422 = vld [vmem:[#allocation14 + $0x328] sm:$0xff]
    %v2423 = vld [vmem:[#allocation14 + $0x330] sm:$0xff]
    %v2424 = vld [vmem:[#allocation14 + $0x338] sm:$0xff]
    %v2425 = vld [vmem:[#allocation14 + $0x340] sm:$0xff]
    %v2426 = vld [vmem:[#allocation14 + $0x348] sm:$0xff]
    %v2427 = vld [vmem:[#allocation14 + $0x350] sm:$0xff]
    %v2428 = vld [vmem:[#allocation14 + $0x358] sm:$0xff]
    %v2429 = vld [vmem:[#allocation14 + $0x360] sm:$0xff]
    %v2430 = vld [vmem:[#allocation14 + $0x368] sm:$0xff]
    %v2431 = vld [vmem:[#allocation14 + $0x370] sm:$0xff]
    %v2432 = vld [vmem:[#allocation14 + $0x378] sm:$0xff]
    %v2433 = vld [vmem:[#allocation14 + $0x380] sm:$0xff]
    %v2434 = vld [vmem:[#allocation14 + $0x388] sm:$0xff]
    %v2435 = vld [vmem:[#allocation14 + $0x390] sm:$0xff]
    %v2436 = vld [vmem:[#allocation14 + $0x398] sm:$0xff]
    %v2437 = vld [vmem:[#allocation14 + $0x3a0] sm:$0xff]
    %v2438 = vld [vmem:[#allocation14 + $0x3a8] sm:$0xff]
    %v2439 = vld [vmem:[#allocation14 + $0x3b0] sm:$0xff]
    %v2440 = vld [vmem:[#allocation14 + $0x3b8] sm:$0xff]
    %v2441 = vld [vmem:[#allocation14 + $0x3c0] sm:$0xff]
    %v2442 = vld [vmem:[#allocation14 + $0x3c8] sm:$0xff]
    %v2443 = vld [vmem:[#allocation14 + $0x3d0] sm:$0xff]
    %v2444 = vld [vmem:[#allocation14 + $0x3d8] sm:$0xff]
    %v2445 = vld [vmem:[#allocation14 + $0x3e0] sm:$0xff]
    %v2446 = vld [vmem:[#allocation14 + $0x3e8] sm:$0xff]
    %v2447 = vld [vmem:[#allocation14 + $0x3f0] sm:$0xff]
    %v2448 = vld [vmem:[#allocation14 + $0x3f8] sm:$0xff]
    %v2449 = vld [vmem:[%s9] sm:$0xf]
    %v2451 = vperm.slane %v2449, 0
    %v2452 = vperm.slane %v2449, 1
    %v2453 = vperm.slane %v2449, 2
    %v2454 = vperm.slane %v2449, 3
    %v2587 = vunpack.c.l.b16 %v2321
    %v2588 = vunpack.c.h.b16 %v2321
    %v2589 = vunpack.c.l.b16 %v2322
    %v2590 = vunpack.c.h.b16 %v2322
    %v2591 = vunpack.c.l.b16 %v2323
    %v2592 = vunpack.c.h.b16 %v2323
    %v2593 = vunpack.c.l.b16 %v2324
    %v2594 = vunpack.c.h.b16 %v2324
    %v2595 = vunpack.c.l.b16 %v2325
    %v2596 = vunpack.c.h.b16 %v2325
    %v2597 = vunpack.c.l.b16 %v2326
    %v2598 = vunpack.c.h.b16 %v2326
    %v2599 = vunpack.c.l.b16 %v2327
    %v2600 = vunpack.c.h.b16 %v2327
    %v2601 = vunpack.c.l.b16 %v2328
    %v2602 = vunpack.c.h.b16 %v2328
    %v2603 = vunpack.c.l.b16 %v2329
    %v2604 = vunpack.c.h.b16 %v2329
    %v2605 = vunpack.c.l.b16 %v2330
    %v2606 = vunpack.c.h.b16 %v2330
    %v2607 = vunpack.c.l.b16 %v2331
    %v2608 = vunpack.c.h.b16 %v2331
    %v2609 = vunpack.c.l.b16 %v2332
    %v2610 = vunpack.c.h.b16 %v2332
    %v2611 = vunpack.c.l.b16 %v2333
    %v2612 = vunpack.c.h.b16 %v2333
    %v2613 = vunpack.c.l.b16 %v2334
    %v2614 = vunpack.c.h.b16 %v2334
    %v2615 = vunpack.c.l.b16 %v2335
    %v2616 = vunpack.c.h.b16 %v2335
    %v2617 = vunpack.c.l.b16 %v2336
    %v2618 = vunpack.c.h.b16 %v2336
    %v2619 = vunpack.c.l.b16 %v2337
    %v2620 = vunpack.c.h.b16 %v2337
    %v2621 = vunpack.c.l.b16 %v2338
    %v2622 = vunpack.c.h.b16 %v2338
    %v2623 = vunpack.c.l.b16 %v2339
    %v2624 = vunpack.c.h.b16 %v2339
    %v2625 = vunpack.c.l.b16 %v2340
    %v2626 = vunpack.c.h.b16 %v2340
    %v2627 = vunpack.c.l.b16 %v2341
    %v2628 = vunpack.c.h.b16 %v2341
    %v2629 = vunpack.c.l.b16 %v2342
    %v2630 = vunpack.c.h.b16 %v2342
    %v2631 = vunpack.c.l.b16 %v2343
    %v2632 = vunpack.c.h.b16 %v2343
    %v2633 = vunpack.c.l.b16 %v2344
    %v2634 = vunpack.c.h.b16 %v2344
    %v2635 = vunpack.c.l.b16 %v2345
    %v2636 = vunpack.c.h.b16 %v2345
    %v2637 = vunpack.c.l.b16 %v2346
    %v2638 = vunpack.c.h.b16 %v2346
    %v2639 = vunpack.c.l.b16 %v2347
    %v2640 = vunpack.c.h.b16 %v2347
    %v2641 = vunpack.c.l.b16 %v2348
    %v2642 = vunpack.c.h.b16 %v2348
    %v2643 = vunpack.c.l.b16 %v2349
    %v2644 = vunpack.c.h.b16 %v2349
    %v2645 = vunpack.c.l.b16 %v2350
    %v2646 = vunpack.c.h.b16 %v2350
    %v2647 = vunpack.c.l.b16 %v2351
    %v2648 = vunpack.c.h.b16 %v2351
    %v2649 = vunpack.c.l.b16 %v2352
    %v2650 = vunpack.c.h.b16 %v2352
    %v2651 = vunpack.c.l.b16 %v2353
    %v2652 = vunpack.c.h.b16 %v2353
    %v2653 = vunpack.c.l.b16 %v2354
    %v2654 = vunpack.c.h.b16 %v2354
    %v2655 = vunpack.c.l.b16 %v2355
    %v2656 = vunpack.c.h.b16 %v2355
    %v2657 = vunpack.c.l.b16 %v2356
    %v2658 = vunpack.c.h.b16 %v2356
    %v2659 = vunpack.c.l.b16 %v2357
    %v2660 = vunpack.c.h.b16 %v2357
    %v2661 = vunpack.c.l.b16 %v2358
    %v2662 = vunpack.c.h.b16 %v2358
    %v2663 = vunpack.c.l.b16 %v2359
    %v2664 = vunpack.c.h.b16 %v2359
    %v2665 = vunpack.c.l.b16 %v2360
    %v2666 = vunpack.c.h.b16 %v2360
    %v2667 = vunpack.c.l.b16 %v2361
    %v2668 = vunpack.c.h.b16 %v2361
    %v2669 = vunpack.c.l.b16 %v2362
    %v2670 = vunpack.c.h.b16 %v2362
    %v2671 = vunpack.c.l.b16 %v2363
    %v2672 = vunpack.c.h.b16 %v2363
    %v2673 = vunpack.c.l.b16 %v2364
    %v2674 = vunpack.c.h.b16 %v2364
    %v2675 = vunpack.c.l.b16 %v2365
    %v2676 = vunpack.c.h.b16 %v2365
    %v2677 = vunpack.c.l.b16 %v2366
    %v2678 = vunpack.c.h.b16 %v2366
    %v2679 = vunpack.c.l.b16 %v2367
    %v2680 = vunpack.c.h.b16 %v2367
    %v2681 = vunpack.c.l.b16 %v2368
    %v2682 = vunpack.c.h.b16 %v2368
    %v2683 = vunpack.c.l.b16 %v2369
    %v2684 = vunpack.c.h.b16 %v2369
    %v2685 = vunpack.c.l.b16 %v2370
    %v2686 = vunpack.c.h.b16 %v2370
    %v2687 = vunpack.c.l.b16 %v2371
    %v2688 = vunpack.c.h.b16 %v2371
    %v2689 = vunpack.c.l.b16 %v2372
    %v2690 = vunpack.c.h.b16 %v2372
    %v2691 = vunpack.c.l.b16 %v2373
    %v2692 = vunpack.c.h.b16 %v2373
    %v2693 = vunpack.c.l.b16 %v2374
    %v2694 = vunpack.c.h.b16 %v2374
    %v2695 = vunpack.c.l.b16 %v2375
    %v2696 = vunpack.c.h.b16 %v2375
    %v2697 = vunpack.c.l.b16 %v2376
    %v2698 = vunpack.c.h.b16 %v2376
    %v2699 = vunpack.c.l.b16 %v2377
    %v2700 = vunpack.c.h.b16 %v2377
    %v2701 = vunpack.c.l.b16 %v2378
    %v2702 = vunpack.c.h.b16 %v2378
    %v2703 = vunpack.c.l.b16 %v2379
    %v2704 = vunpack.c.h.b16 %v2379
    %v2705 = vunpack.c.l.b16 %v2380
    %v2706 = vunpack.c.h.b16 %v2380
    %v2707 = vunpack.c.l.b16 %v2381
    %v2708 = vunpack.c.h.b16 %v2381
    %v2709 = vunpack.c.l.b16 %v2382
    %v2710 = vunpack.c.h.b16 %v2382
    %v2711 = vunpack.c.l.b16 %v2383
    %v2712 = vunpack.c.h.b16 %v2383
    %v2713 = vunpack.c.l.b16 %v2384
    %v2714 = vunpack.c.h.b16 %v2384
    %v2715 = vunpack.c.l.b16 %v2385
    %v2716 = vunpack.c.h.b16 %v2385
    %v2717 = vunpack.c.l.b16 %v2386
    %v2718 = vunpack.c.h.b16 %v2386
    %v2719 = vunpack.c.l.b16 %v2387
    %v2720 = vunpack.c.h.b16 %v2387
    %v2721 = vunpack.c.l.b16 %v2388
    %v2722 = vunpack.c.h.b16 %v2388
    %v2723 = vunpack.c.l.b16 %v2389
    %v2724 = vunpack.c.h.b16 %v2389
    %v2725 = vunpack.c.l.b16 %v2390
    %v2726 = vunpack.c.h.b16 %v2390
    %v2727 = vunpack.c.l.b16 %v2391
    %v2728 = vunpack.c.h.b16 %v2391
    %v2729 = vunpack.c.l.b16 %v2392
    %v2730 = vunpack.c.h.b16 %v2392
    %v2731 = vunpack.c.l.b16 %v2393
    %v2732 = vunpack.c.h.b16 %v2393
    %v2733 = vunpack.c.l.b16 %v2394
    %v2734 = vunpack.c.h.b16 %v2394
    %v2735 = vunpack.c.l.b16 %v2395
    %v2736 = vunpack.c.h.b16 %v2395
    %v2737 = vunpack.c.l.b16 %v2396
    %v2738 = vunpack.c.h.b16 %v2396
    %v2739 = vunpack.c.l.b16 %v2397
    %v2740 = vunpack.c.h.b16 %v2397
    %v2741 = vunpack.c.l.b16 %v2398
    %v2742 = vunpack.c.h.b16 %v2398
    %v2743 = vunpack.c.l.b16 %v2399
    %v2744 = vunpack.c.h.b16 %v2399
    %v2745 = vunpack.c.l.b16 %v2400
    %v2746 = vunpack.c.h.b16 %v2400
    %v2747 = vunpack.c.l.b16 %v2401
    %v2748 = vunpack.c.h.b16 %v2401
    %v2749 = vunpack.c.l.b16 %v2402
    %v2750 = vunpack.c.h.b16 %v2402
    %v2751 = vunpack.c.l.b16 %v2403
    %v2752 = vunpack.c.h.b16 %v2403
    %v2753 = vunpack.c.l.b16 %v2404
    %v2754 = vunpack.c.h.b16 %v2404
    %v2755 = vunpack.c.l.b16 %v2405
    %v2756 = vunpack.c.h.b16 %v2405
    %v2757 = vunpack.c.l.b16 %v2406
    %v2758 = vunpack.c.h.b16 %v2406
    %v2759 = vunpack.c.l.b16 %v2407
    %v2760 = vunpack.c.h.b16 %v2407
    %v2761 = vunpack.c.l.b16 %v2408
    %v2762 = vunpack.c.h.b16 %v2408
    %v2763 = vunpack.c.l.b16 %v2409
    %v2764 = vunpack.c.h.b16 %v2409
    %v2765 = vunpack.c.l.b16 %v2410
    %v2766 = vunpack.c.h.b16 %v2410
    %v2767 = vunpack.c.l.b16 %v2411
    %v2768 = vunpack.c.h.b16 %v2411
    %v2769 = vunpack.c.l.b16 %v2412
    %v2770 = vunpack.c.h.b16 %v2412
    %v2771 = vunpack.c.l.b16 %v2413
    %v2772 = vunpack.c.h.b16 %v2413
    %v2773 = vunpack.c.l.b16 %v2414
    %v2774 = vunpack.c.h.b16 %v2414
    %v2775 = vunpack.c.l.b16 %v2415
    %v2776 = vunpack.c.h.b16 %v2415
    %v2777 = vunpack.c.l.b16 %v2416
    %v2778 = vunpack.c.h.b16 %v2416
    %v2779 = vunpack.c.l.b16 %v2417
    %v2780 = vunpack.c.h.b16 %v2417
    %v2781 = vunpack.c.l.b16 %v2418
    %v2782 = vunpack.c.h.b16 %v2418
    %v2783 = vunpack.c.l.b16 %v2419
    %v2784 = vunpack.c.h.b16 %v2419
    %v2785 = vunpack.c.l.b16 %v2420
    %v2786 = vunpack.c.h.b16 %v2420
    %v2787 = vunpack.c.l.b16 %v2421
    %v2788 = vunpack.c.h.b16 %v2421
    %v2789 = vunpack.c.l.b16 %v2422
    %v2790 = vunpack.c.h.b16 %v2422
    %v2791 = vunpack.c.l.b16 %v2423
    %v2792 = vunpack.c.h.b16 %v2423
    %v2793 = vunpack.c.l.b16 %v2424
    %v2794 = vunpack.c.h.b16 %v2424
    %v2795 = vunpack.c.l.b16 %v2425
    %v2796 = vunpack.c.h.b16 %v2425
    %v2797 = vunpack.c.l.b16 %v2426
    %v2798 = vunpack.c.h.b16 %v2426
    %v2799 = vunpack.c.l.b16 %v2427
    %v2800 = vunpack.c.h.b16 %v2427
    %v2801 = vunpack.c.l.b16 %v2428
    %v2802 = vunpack.c.h.b16 %v2428
    %v2803 = vunpack.c.l.b16 %v2429
    %v2804 = vunpack.c.h.b16 %v2429
    %v2805 = vunpack.c.l.b16 %v2430
    %v2806 = vunpack.c.h.b16 %v2430
    %v2807 = vunpack.c.l.b16 %v2431
    %v2808 = vunpack.c.h.b16 %v2431
    %v2809 = vunpack.c.l.b16 %v2432
    %v2810 = vunpack.c.h.b16 %v2432
    %v2811 = vunpack.c.l.b16 %v2433
    %v2812 = vunpack.c.h.b16 %v2433
    %v2813 = vunpack.c.l.b16 %v2434
    %v2814 = vunpack.c.h.b16 %v2434
    %v2815 = vunpack.c.l.b16 %v2435
    %v2816 = vunpack.c.h.b16 %v2435
    %v2817 = vunpack.c.l.b16 %v2436
    %v2818 = vunpack.c.h.b16 %v2436
    %v2819 = vunpack.c.l.b16 %v2437
    %v2820 = vunpack.c.h.b16 %v2437
    %v2821 = vunpack.c.l.b16 %v2438
    %v2822 = vunpack.c.h.b16 %v2438
    %v2823 = vunpack.c.l.b16 %v2439
    %v2824 = vunpack.c.h.b16 %v2439
    %v2825 = vunpack.c.l.b16 %v2440
    %v2826 = vunpack.c.h.b16 %v2440
    %v2827 = vunpack.c.l.b16 %v2441
    %v2828 = vunpack.c.h.b16 %v2441
    %v2829 = vunpack.c.l.b16 %v2442
    %v2830 = vunpack.c.h.b16 %v2442
    %v2831 = vunpack.c.l.b16 %v2443
    %v2832 = vunpack.c.h.b16 %v2443
    %v2833 = vunpack.c.l.b16 %v2444
    %v2834 = vunpack.c.h.b16 %v2444
    %v2835 = vunpack.c.l.b16 %v2445
    %v2836 = vunpack.c.h.b16 %v2445
    %v2837 = vunpack.c.l.b16 %v2446
    %v2838 = vunpack.c.h.b16 %v2446
    %v2839 = vunpack.c.l.b16 %v2447
    %v2840 = vunpack.c.h.b16 %v2447
    %v2841 = vunpack.c.l.b16 %v2448
    %v2842 = vunpack.c.h.b16 %v2448
    %v2843 = vpack.c.b16 %v2591, %v2587
    %v2844 = vpack.c.b16 %v2592, %v2588
    %v2845 = vpack.c.b16 %v2593, %v2589
    %v2846 = vpack.c.b16 %v2594, %v2590
    %v2847 = vpack.c.b16 %v2599, %v2595
    %v2848 = vpack.c.b16 %v2600, %v2596
    %v2849 = vpack.c.b16 %v2601, %v2597
    %v2850 = vpack.c.b16 %v2602, %v2598
    %v2851 = vpack.c.b16 %v2607, %v2603
    %v2852 = vpack.c.b16 %v2608, %v2604
    %v2853 = vpack.c.b16 %v2609, %v2605
    %v2854 = vpack.c.b16 %v2610, %v2606
    %v2855 = vpack.c.b16 %v2615, %v2611
    %v2856 = vpack.c.b16 %v2616, %v2612
    %v2857 = vpack.c.b16 %v2617, %v2613
    %v2858 = vpack.c.b16 %v2618, %v2614
    %v2859 = vpack.c.b16 %v2623, %v2619
    %v2860 = vpack.c.b16 %v2624, %v2620
    %v2861 = vpack.c.b16 %v2625, %v2621
    %v2862 = vpack.c.b16 %v2626, %v2622
    %v2863 = vpack.c.b16 %v2631, %v2627
    %v2864 = vpack.c.b16 %v2632, %v2628
    %v2865 = vpack.c.b16 %v2633, %v2629
    %v2866 = vpack.c.b16 %v2634, %v2630
    %v2867 = vpack.c.b16 %v2639, %v2635
    %v2868 = vpack.c.b16 %v2640, %v2636
    %v2869 = vpack.c.b16 %v2641, %v2637
    %v2870 = vpack.c.b16 %v2642, %v2638
    %v2871 = vpack.c.b16 %v2647, %v2643
    %v2872 = vpack.c.b16 %v2648, %v2644
    %v2873 = vpack.c.b16 %v2649, %v2645
    %v2874 = vpack.c.b16 %v2650, %v2646
    %v2875 = vpack.c.b16 %v2655, %v2651
    %v2876 = vpack.c.b16 %v2656, %v2652
    %v2877 = vpack.c.b16 %v2657, %v2653
    %v2878 = vpack.c.b16 %v2658, %v2654
    %v2879 = vpack.c.b16 %v2663, %v2659
    %v2880 = vpack.c.b16 %v2664, %v2660
    %v2881 = vpack.c.b16 %v2665, %v2661
    %v2882 = vpack.c.b16 %v2666, %v2662
    %v2883 = vpack.c.b16 %v2671, %v2667
    %v2884 = vpack.c.b16 %v2672, %v2668
    %v2885 = vpack.c.b16 %v2673, %v2669
    %v2886 = vpack.c.b16 %v2674, %v2670
    %v2887 = vpack.c.b16 %v2679, %v2675
    %v2888 = vpack.c.b16 %v2680, %v2676
    %v2889 = vpack.c.b16 %v2681, %v2677
    %v2890 = vpack.c.b16 %v2682, %v2678
    %v2891 = vpack.c.b16 %v2687, %v2683
    %v2892 = vpack.c.b16 %v2688, %v2684
    %v2893 = vpack.c.b16 %v2689, %v2685
    %v2894 = vpack.c.b16 %v2690, %v2686
    %v2895 = vpack.c.b16 %v2695, %v2691
    %v2896 = vpack.c.b16 %v2696, %v2692
    %v2897 = vpack.c.b16 %v2697, %v2693
    %v2898 = vpack.c.b16 %v2698, %v2694
    %v2899 = vpack.c.b16 %v2703, %v2699
    %v2900 = vpack.c.b16 %v2704, %v2700
    %v2901 = vpack.c.b16 %v2705, %v2701
    %v2902 = vpack.c.b16 %v2706, %v2702
    %v2903 = vpack.c.b16 %v2711, %v2707
    %v2904 = vpack.c.b16 %v2712, %v2708
    %v2905 = vpack.c.b16 %v2713, %v2709
    %v2906 = vpack.c.b16 %v2714, %v2710
    %v2907 = vpack.c.b16 %v2719, %v2715
    %v2908 = vpack.c.b16 %v2720, %v2716
    %v2909 = vpack.c.b16 %v2721, %v2717
    %v2910 = vpack.c.b16 %v2722, %v2718
    %v2911 = vpack.c.b16 %v2727, %v2723
    %v2912 = vpack.c.b16 %v2728, %v2724
    %v2913 = vpack.c.b16 %v2729, %v2725
    %v2914 = vpack.c.b16 %v2730, %v2726
    %v2915 = vpack.c.b16 %v2735, %v2731
    %v2916 = vpack.c.b16 %v2736, %v2732
    %v2917 = vpack.c.b16 %v2737, %v2733
    %v2918 = vpack.c.b16 %v2738, %v2734
    %v2919 = vpack.c.b16 %v2743, %v2739
    %v2920 = vpack.c.b16 %v2744, %v2740
    %v2921 = vpack.c.b16 %v2745, %v2741
    %v2922 = vpack.c.b16 %v2746, %v2742
    %v2923 = vpack.c.b16 %v2751, %v2747
    %v2924 = vpack.c.b16 %v2752, %v2748
    %v2925 = vpack.c.b16 %v2753, %v2749
    %v2926 = vpack.c.b16 %v2754, %v2750
    %v2927 = vpack.c.b16 %v2759, %v2755
    %v2928 = vpack.c.b16 %v2760, %v2756
    %v2929 = vpack.c.b16 %v2761, %v2757
    %v2930 = vpack.c.b16 %v2762, %v2758
    %v2931 = vpack.c.b16 %v2767, %v2763
    %v2932 = vpack.c.b16 %v2768, %v2764
    %v2933 = vpack.c.b16 %v2769, %v2765
    %v2934 = vpack.c.b16 %v2770, %v2766
    %v2935 = vpack.c.b16 %v2775, %v2771
    %v2936 = vpack.c.b16 %v2776, %v2772
    %v2937 = vpack.c.b16 %v2777, %v2773
    %v2938 = vpack.c.b16 %v2778, %v2774
    %v2939 = vpack.c.b16 %v2783, %v2779
    %v2940 = vpack.c.b16 %v2784, %v2780
    %v2941 = vpack.c.b16 %v2785, %v2781
    %v2942 = vpack.c.b16 %v2786, %v2782
    %v2943 = vpack.c.b16 %v2791, %v2787
    %v2944 = vpack.c.b16 %v2792, %v2788
    %v2945 = vpack.c.b16 %v2793, %v2789
    %v2946 = vpack.c.b16 %v2794, %v2790
    %v2947 = vpack.c.b16 %v2799, %v2795
    %v2948 = vpack.c.b16 %v2800, %v2796
    %v2949 = vpack.c.b16 %v2801, %v2797
    %v2950 = vpack.c.b16 %v2802, %v2798
    %v2951 = vpack.c.b16 %v2807, %v2803
    %v2952 = vpack.c.b16 %v2808, %v2804
    %v2953 = vpack.c.b16 %v2809, %v2805
    %v2954 = vpack.c.b16 %v2810, %v2806
    %v2955 = vpack.c.b16 %v2815, %v2811
    %v2956 = vpack.c.b16 %v2816, %v2812
    %v2957 = vpack.c.b16 %v2817, %v2813
    %v2958 = vpack.c.b16 %v2818, %v2814
    %v2959 = vpack.c.b16 %v2823, %v2819
    %v2960 = vpack.c.b16 %v2824, %v2820
    %v2961 = vpack.c.b16 %v2825, %v2821
    %v2962 = vpack.c.b16 %v2826, %v2822
    %v2963 = vpack.c.b16 %v2831, %v2827
    %v2964 = vpack.c.b16 %v2832, %v2828
    %v2965 = vpack.c.b16 %v2833, %v2829
    %v2966 = vpack.c.b16 %v2834, %v2830
    %v2967 = vpack.c.b16 %v2839, %v2835
    %v2968 = vpack.c.b16 %v2840, %v2836
    %v2969 = vpack.c.b16 %v2841, %v2837
    %v2970 = vpack.c.b16 %v2842, %v2838
    %3099 = vmatpush.bf16.msra.mxu0 %v2871
    %3100 = vmatpush.bf16.msra.mxu0 %v2867
    %3101 = vmatpush.bf16.msra.mxu0 %v2863
    %3102 = vmatpush.bf16.msra.mxu0 %v2859
    %3103 = vmatpush.bf16.msra.mxu0 %v2855
    %3104 = vmatpush.bf16.msra.mxu0 %v2851
    %3105 = vmatpush.bf16.msra.mxu0 %v2847
    %3106 = vmatpush.bf16.msra.mxu0 %v2843
    %3107 = vmatmul.bf16.gmra.mxu0 %v2317
    %v3108 = vpop.f32.mrf.mxu0
    %v3109 = vadd.f32 %v2451, %v3108
    %v3110 = vpop.f32.mrf.mxu0
    %3111 = vdwg.mxu0
    %3112 = vmatpush.bf16.msra.mxu0 %v2903
    %3113 = vmatpush.bf16.msra.mxu0 %v2899
    %3114 = vmatpush.bf16.msra.mxu0 %v2895
    %3115 = vmatpush.bf16.msra.mxu0 %v2891
    %3116 = vmatpush.bf16.msra.mxu0 %v2887
    %3117 = vmatpush.bf16.msra.mxu0 %v2883
    %3118 = vmatpush.bf16.msra.mxu0 %v2879
    %3119 = vmatpush.bf16.msra.mxu0 %v2875
    %3120 = vmatmul.bf16.gmra.mxu0 %v2318
    %v3121 = vpop.f32.mrf.mxu0
    %v3122 = vadd.f32 %v3109, %v3121
    %v3123 = vpop.f32.mrf.mxu0
    %3124 = vdwg.mxu0
    %3125 = vmatpush.bf16.msra.mxu0 %v2935
    %3126 = vmatpush.bf16.msra.mxu0 %v2931
    %3127 = vmatpush.bf16.msra.mxu0 %v2927
    %3128 = vmatpush.bf16.msra.mxu0 %v2923
    %3129 = vmatpush.bf16.msra.mxu0 %v2919
    %3130 = vmatpush.bf16.msra.mxu0 %v2915
    %3131 = vmatpush.bf16.msra.mxu0 %v2911
    %3132 = vmatpush.bf16.msra.mxu0 %v2907
    %3133 = vmatmul.bf16.gmra.mxu0 %v2319
    %v3134 = vpop.f32.mrf.mxu0
    %v3135 = vadd.f32 %v3122, %v3134
    %v3136 = vpop.f32.mrf.mxu0
    %3137 = vdwg.mxu0
    %3138 = vmatpush.bf16.msra.mxu0 %v2967
    %3139 = vmatpush.bf16.msra.mxu0 %v2963
    %3140 = vmatpush.bf16.msra.mxu0 %v2959
    %3141 = vmatpush.bf16.msra.mxu0 %v2955
    %3142 = vmatpush.bf16.msra.mxu0 %v2951
    %3143 = vmatpush.bf16.msra.mxu0 %v2947
    %3144 = vmatpush.bf16.msra.mxu0 %v2943
    %3145 = vmatpush.bf16.msra.mxu0 %v2939
    %3146 = vmatmul.bf16.gmra.mxu0 %v2320
    %v3147 = vpop.f32.mrf.mxu0
    %v3148 = vadd.f32 %v3135, %v3147
    %v3149 = vpop.f32.mrf.mxu0
    %3150 = vdwg.mxu0
    %3151 = vmatpush.bf16.msra.mxu0 %v2872
    %3152 = vmatpush.bf16.msra.mxu0 %v2868
    %3153 = vmatpush.bf16.msra.mxu0 %v2864
    %3154 = vmatpush.bf16.msra.mxu0 %v2860
    %3155 = vmatpush.bf16.msra.mxu0 %v2856
    %3156 = vmatpush.bf16.msra.mxu0 %v2852
    %3157 = vmatpush.bf16.msra.mxu0 %v2848
    %3158 = vmatpush.bf16.msra.mxu0 %v2844
    %3159 = vmatmul.bf16.gmra.mxu0 %v2317
    %v3160 = vpop.f32.mrf.mxu0
    %v3161 = vadd.f32 %v2452, %v3160
    %v3162 = vpop.f32.mrf.mxu0
    %3163 = vdwg.mxu0
    %3164 = vmatpush.bf16.msra.mxu0 %v2904
    %3165 = vmatpush.bf16.msra.mxu0 %v2900
    %3166 = vmatpush.bf16.msra.mxu0 %v2896
    %3167 = vmatpush.bf16.msra.mxu0 %v2892
    %3168 = vmatpush.bf16.msra.mxu0 %v2888
    %3169 = vmatpush.bf16.msra.mxu0 %v2884
    %3170 = vmatpush.bf16.msra.mxu0 %v2880
    %3171 = vmatpush.bf16.msra.mxu0 %v2876
    %3172 = vmatmul.bf16.gmra.mxu0 %v2318
    %v3173 = vpop.f32.mrf.mxu0
    %v3174 = vadd.f32 %v3161, %v3173
    %v3175 = vpop.f32.mrf.mxu0
    %3176 = vdwg.mxu0
    %3177 = vmatpush.bf16.msra.mxu0 %v2936
    %3178 = vmatpush.bf16.msra.mxu0 %v2932
    %3179 = vmatpush.bf16.msra.mxu0 %v2928
    %3180 = vmatpush.bf16.msra.mxu0 %v2924
    %3181 = vmatpush.bf16.msra.mxu0 %v2920
    %3182 = vmatpush.bf16.msra.mxu0 %v2916
    %3183 = vmatpush.bf16.msra.mxu0 %v2912
    %3184 = vmatpush.bf16.msra.mxu0 %v2908
    %3185 = vmatmul.bf16.gmra.mxu0 %v2319
    %v3186 = vpop.f32.mrf.mxu0
    %v3187 = vadd.f32 %v3174, %v3186
    %v3188 = vpop.f32.mrf.mxu0
    %3189 = vdwg.mxu0
    %3190 = vmatpush.bf16.msra.mxu0 %v2968
    %3191 = vmatpush.bf16.msra.mxu0 %v2964
    %3192 = vmatpush.bf16.msra.mxu0 %v2960
    %3193 = vmatpush.bf16.msra.mxu0 %v2956
    %3194 = vmatpush.bf16.msra.mxu0 %v2952
    %3195 = vmatpush.bf16.msra.mxu0 %v2948
    %3196 = vmatpush.bf16.msra.mxu0 %v2944
    %3197 = vmatpush.bf16.msra.mxu0 %v2940
    %3198 = vmatmul.bf16.gmra.mxu0 %v2320
    %v3199 = vpop.f32.mrf.mxu0
    %v3200 = vadd.f32 %v3187, %v3199
    %v3201 = vpop.f32.mrf.mxu0
    %3202 = vdwg.mxu0
    %3203 = vmatpush.bf16.msra.mxu0 %v2873
    %3204 = vmatpush.bf16.msra.mxu0 %v2869
    %3205 = vmatpush.bf16.msra.mxu0 %v2865
    %3206 = vmatpush.bf16.msra.mxu0 %v2861
    %3207 = vmatpush.bf16.msra.mxu0 %v2857
    %3208 = vmatpush.bf16.msra.mxu0 %v2853
    %3209 = vmatpush.bf16.msra.mxu0 %v2849
    %3210 = vmatpush.bf16.msra.mxu0 %v2845
    %3211 = vmatmul.bf16.gmra.mxu0 %v2317
    %v3212 = vpop.f32.mrf.mxu0
    %v3213 = vadd.f32 %v2453, %v3212
    %v3214 = vpop.f32.mrf.mxu0
    %3215 = vdwg.mxu0
    %3216 = vmatpush.bf16.msra.mxu0 %v2905
    %3217 = vmatpush.bf16.msra.mxu0 %v2901
    %3218 = vmatpush.bf16.msra.mxu0 %v2897
    %3219 = vmatpush.bf16.msra.mxu0 %v2893
    %3220 = vmatpush.bf16.msra.mxu0 %v2889
    %3221 = vmatpush.bf16.msra.mxu0 %v2885
    %3222 = vmatpush.bf16.msra.mxu0 %v2881
    %3223 = vmatpush.bf16.msra.mxu0 %v2877
    %3224 = vmatmul.bf16.gmra.mxu0 %v2318
    %v3225 = vpop.f32.mrf.mxu0
    %v3226 = vadd.f32 %v3213, %v3225
    %v3227 = vpop.f32.mrf.mxu0
    %3228 = vdwg.mxu0
    %3229 = vmatpush.bf16.msra.mxu0 %v2937
    %3230 = vmatpush.bf16.msra.mxu0 %v2933
    %3231 = vmatpush.bf16.msra.mxu0 %v2929
    %3232 = vmatpush.bf16.msra.mxu0 %v2925
    %3233 = vmatpush.bf16.msra.mxu0 %v2921
    %3234 = vmatpush.bf16.msra.mxu0 %v2917
    %3235 = vmatpush.bf16.msra.mxu0 %v2913
    %3236 = vmatpush.bf16.msra.mxu0 %v2909
    %3237 = vmatmul.bf16.gmra.mxu0 %v2319
    %v3238 = vpop.f32.mrf.mxu0
    %v3239 = vadd.f32 %v3226, %v3238
    %v3240 = vpop.f32.mrf.mxu0
    %3241 = vdwg.mxu0
    %3242 = vmatpush.bf16.msra.mxu0 %v2969
    %3243 = vmatpush.bf16.msra.mxu0 %v2965
    %3244 = vmatpush.bf16.msra.mxu0 %v2961
    %3245 = vmatpush.bf16.msra.mxu0 %v2957
    %3246 = vmatpush.bf16.msra.mxu0 %v2953
    %3247 = vmatpush.bf16.msra.mxu0 %v2949
    %3248 = vmatpush.bf16.msra.mxu0 %v2945
    %3249 = vmatpush.bf16.msra.mxu0 %v2941
    %3250 = vmatmul.bf16.gmra.mxu0 %v2320
    %v3251 = vpop.f32.mrf.mxu0
    %v3252 = vadd.f32 %v3239, %v3251
    %v3253 = vpop.f32.mrf.mxu0
    %3254 = vdwg.mxu0
    %3255 = vmatpush.bf16.msra.mxu0 %v2874
    %3256 = vmatpush.bf16.msra.mxu0 %v2870
    %3257 = vmatpush.bf16.msra.mxu0 %v2866
    %3258 = vmatpush.bf16.msra.mxu0 %v2862
    %3259 = vmatpush.bf16.msra.mxu0 %v2858
    %3260 = vmatpush.bf16.msra.mxu0 %v2854
    %3261 = vmatpush.bf16.msra.mxu0 %v2850
    %3262 = vmatpush.bf16.msra.mxu0 %v2846
    %3263 = vmatmul.bf16.gmra.mxu0 %v2317
    %v3264 = vpop.f32.mrf.mxu0
    %v3265 = vadd.f32 %v2454, %v3264
    %v3266 = vpop.f32.mrf.mxu0
    %3267 = vdwg.mxu0
    %3268 = vmatpush.bf16.msra.mxu0 %v2906
    %3269 = vmatpush.bf16.msra.mxu0 %v2902
    %3270 = vmatpush.bf16.msra.mxu0 %v2898
    %3271 = vmatpush.bf16.msra.mxu0 %v2894
    %3272 = vmatpush.bf16.msra.mxu0 %v2890
    %3273 = vmatpush.bf16.msra.mxu0 %v2886
    %3274 = vmatpush.bf16.msra.mxu0 %v2882
    %3275 = vmatpush.bf16.msra.mxu0 %v2878
    %3276 = vmatmul.bf16.gmra.mxu0 %v2318
    %v3277 = vpop.f32.mrf.mxu0
    %v3278 = vadd.f32 %v3265, %v3277
    %v3279 = vpop.f32.mrf.mxu0
    %3280 = vdwg.mxu0
    %3281 = vmatpush.bf16.msra.mxu0 %v2938
    %3282 = vmatpush.bf16.msra.mxu0 %v2934
    %3283 = vmatpush.bf16.msra.mxu0 %v2930
    %3284 = vmatpush.bf16.msra.mxu0 %v2926
    %3285 = vmatpush.bf16.msra.mxu0 %v2922
    %3286 = vmatpush.bf16.msra.mxu0 %v2918
    %3287 = vmatpush.bf16.msra.mxu0 %v2914
    %3288 = vmatpush.bf16.msra.mxu0 %v2910
    %3289 = vmatmul.bf16.gmra.mxu0 %v2319
    %v3290 = vpop.f32.mrf.mxu0
    %v3291 = vadd.f32 %v3278, %v3290
    %v3292 = vpop.f32.mrf.mxu0
    %3293 = vdwg.mxu0
    %3294 = vmatpush.bf16.msra.mxu0 %v2970
    %3295 = vmatpush.bf16.msra.mxu0 %v2966
    %3296 = vmatpush.bf16.msra.mxu0 %v2962
    %3297 = vmatpush.bf16.msra.mxu0 %v2958
    %3298 = vmatpush.bf16.msra.mxu0 %v2954
    %3299 = vmatpush.bf16.msra.mxu0 %v2950
    %3300 = vmatpush.bf16.msra.mxu0 %v2946
    %3301 = vmatpush.bf16.msra.mxu0 %v2942
    %3302 = vmatmul.bf16.gmra.mxu0 %v2320
    %v3303 = vpop.f32.mrf.mxu0
    %v3304 = vadd.f32 %v3291, %v3303
    %v3305 = vpop.f32.mrf.mxu0
    %3306 = vdwg.mxu0
    %v3307 = vadd.f32 %v1571, %v3148
    %v3308 = vadd.f32 %v1623, %v3200
    %v3309 = vadd.f32 %v1675, %v3252
    %v3310 = vadd.f32 %v1727, %v3304
    %v3315 = vrot.slane %v3308, 6
    %v3316 = vrot.slane %v3309, 4
    %v3317 = vrot.slane %v3310, 2
    %vm3318 = vcmask 1041408
    %v3319 = vsel %vm3318, %v3307, %v3315
    %vm3320 = vcmask 1045508
    %v3321 = vsel %vm3320, %v3316, %v3317
    %vm3322 = vcmask 1043456
    %v3323 = vsel %vm3322, %v3319, %v3321
    %3325 = vst [vmem:[#allocation16] sm:$0xff] %v3323
    // Predicated region
    $region74: #{tpu_custom_call.1} parent=1 // pred_check
      _
    $region75: #{tpu_custom_call.1} parent=1 // pred_check_branch
      %3327 = sbr.rel (0) target = $region77
    $region76: #{tpu_custom_call.1} parent=1 // pred_region
      %3329 = vsyncadd [#allocation4], 0
      %s3331 = sshll.u32 [#allocation16], 4
      %s3332 = int_to_ptr.vmem [resolvable:$true] %s3331
      %s3333 = sshll.u32 %s10, 4
      %s3334 = int_to_ptr.hbm [resolvable:$true] %s3333
      %3336 = dma.vmem_to_hbm [thread:$0]  %s3332, 128, %s3334, [#allocation4]
    $region77: #{tpu_custom_call.1} parent=1 // pred_fallthru
      _
    // Predicated region
    $region78: #{tpu_custom_call.1} parent=1 // pred_check
      _
    $region79: #{tpu_custom_call.1} parent=1 // pred_check_branch
      %3338 = sbr.rel (0) target = $region81
    $region80: #{tpu_custom_call.1} parent=1 // pred_region
      %3340 = dma.done [#allocation4], 128
    $region81: #{tpu_custom_call.1} parent=1 // pred_fallthru
      _
    %3341 = vsyncpa [#allocation3], 1
    %3342 = vsyncpa [#allocation6], 1
    %3343 = vsyncpa [#allocation9], 1
    %3344 = vsyncpa [#allocation12], 1
    %3345 = vsyncpa [#allocation15], 1
    %3346 = vsyncpa [#allocation4], 1

</llo_original>
